<compile_context>
chip_gen: v7x
topology: tpu7x:2x2x1
jax: 0.10.0
libtpu: 0.0.40
codegen_flags: <defaults>
</compile_context>

<pallas_src>
import functools

import jax
import jax.numpy as jnp
from jax.experimental import pallas as pl
from jax.experimental.pallas import tpu as pltpu


def _expert_kernel(x_ref, vgu_ref, u1_ref, u3_ref, v2_ref, u2_ref,
                   out_ref, xv_sc, hv_sc):
    i = pl.program_id(1)

    @pl.when(i == 0)
    def _init():
        # One MXU pass of the token tile over all four V factors
        # [V1s | V1d | V3s | V3d]; cached across the I tiles of this block.
        xv_sc[...] = jnp.dot(
            x_ref[...], vgu_ref[...],
            preferred_element_type=jnp.float32).astype(xv_sc.dtype)
        hv_sc[...] = jnp.zeros_like(hv_sc)

    r13 = u1_ref.shape[0]                      # fused (share + delta) rank
    # gate/up for this I tile; keep f32 until the single bf16 cast below.
    gate = jnp.dot(xv_sc[:, :r13], u1_ref[...],
                   preferred_element_type=jnp.float32)         # (tm, ti) f32
    up = jnp.dot(xv_sc[:, r13:], u3_ref[...],
                 preferred_element_type=jnp.float32)           # (tm, ti) f32
    h = (jax.nn.silu(gate) * up).astype(x_ref.dtype)           # one cast -> MXU
    # Down-projection V stage, accumulated over I tiles in f32 scratch.
    hv_sc[...] += jnp.dot(h, v2_ref[...], preferred_element_type=jnp.float32)

    @pl.when(i == pl.num_programs(1) - 1)
    def _finalize():
        out_ref[...] = jnp.dot(
            hv_sc[...].astype(x_ref.dtype), u2_ref[...],
            preferred_element_type=jnp.float32).astype(out_ref.dtype)


def share_svd_expert_forward(hidden_states, params, *, tm=128, ti=128):
    """hidden_states: (..., H) bf16 -> (..., H) bf16."""
    orig_shape = hidden_states.shape
    H = orig_shape[-1]
    x = hidden_states.reshape(-1, H)
    T = x.shape[0]
    dtype = x.dtype

    # ---- fuse share + delta factors (host-side, tiny concatenations) ----
    # gate/up V-stage fused into one (H, 2*R13) matrix.
    vgu = jnp.concatenate([params["w1_v1"], params["v1"],
                           params["w3_v3"], params["v3"]], axis=1)   # (H, 2*R13)
    u1 = jnp.concatenate([params["w1_u1"], params["u1"]], axis=0)    # (R13, I)
    u3 = jnp.concatenate([params["w3_u3"], params["u3"]], axis=0)    # (R13, I)
    v2 = jnp.concatenate([params["w2_v2"], params["v2"]], axis=1)    # (I, R13)
    u2 = jnp.concatenate([params["w2_u2"], params["u2"]], axis=0)    # (R13, H)

    r13 = u1.shape[0]
    inter = u1.shape[1]

    # Tile-size sanitation: I tiles must be 128-lane aligned or full.
    if inter % ti != 0 or ti % 128 != 0:
        ti = inter
    assert tm % 8 == 0
    t_pad = pl.cdiv(T, tm) * tm
    if t_pad != T:
        x = jnp.pad(x, ((0, t_pad - T), (0, 0)))

    grid = (t_pad // tm, inter // ti)

    out = pl.pallas_call(
        _expert_kernel,
        out_shape=jax.ShapeDtypeStruct((t_pad, H), dtype),
        grid_spec=pltpu.PrefetchScalarGridSpec(
            num_scalar_prefetch=0,
            grid=grid,
            in_specs=[
                pl.BlockSpec((tm, H), lambda t, i: (t, 0)),        # x (resident over i)
                pl.BlockSpec((H, 2 * r13), lambda t, i: (0, 0)),   # fused gate/up V
                pl.BlockSpec((r13, ti), lambda t, i: (0, i)),      # fused gate U tile
                pl.BlockSpec((r13, ti), lambda t, i: (0, i)),      # fused up   U tile
                pl.BlockSpec((ti, r13), lambda t, i: (i, 0)),      # fused down V tile
                pl.BlockSpec((r13, H), lambda t, i: (0, 0)),       # fused down U
            ],
            out_specs=pl.BlockSpec((tm, H), lambda t, i: (t, 0)),
            scratch_shapes=[
                pltpu.VMEM((tm, 2 * r13), dtype),      # cached x @ [V1|V3]
                pltpu.VMEM((tm, r13), jnp.float32),    # f32 accumulator over I
            ],
        ),
        compiler_params=pltpu.CompilerParams(
            dimension_semantics=("parallel", "arbitrary"),
            vmem_limit_bytes=32 * 1024 * 1024,
        ),
    )(x, vgu, u1, u3, v2, u2)

    return out[:T].reshape(orig_shape)


def reference_forward(hidden_states, params):
    """Pure-JAX emulation of the PyTorch module (bf16 per nn.Linear)."""
    def lin(a, w):
        return jnp.dot(a, w, preferred_element_type=jnp.float32).astype(jnp.bfloat16)

    x = hidden_states
    gate = lin(lin(x, params["w1_v1"]), params["w1_u1"]) + \
           lin(lin(x, params["v1"]), params["u1"])
    up = lin(lin(x, params["w3_v3"]), params["w3_u3"]) + \
         lin(lin(x, params["v3"]), params["u3"])
    h = jax.nn.silu(gate) * up
    return lin(lin(h, params["w2_v2"]), params["w2_u2"]) + \
           lin(lin(h, params["v2"]), params["u2"])


def init_params(key, H, I, Rs, Rd, scale=0.05):
    ks = jax.random.split(key, 12)

    def init(k, shape):
        return (scale * jax.random.normal(k, shape, jnp.float32)).astype(jnp.bfloat16)

    # Weights stored pre-transposed to (in_dim, out_dim) for x @ W.
    return {
        # shared SVD factors
        "w1_v1": init(ks[0], (H, Rs)), "w1_u1": init(ks[1], (Rs, I)),
        "w3_v3": init(ks[2], (H, Rs)), "w3_u3": init(ks[3], (Rs, I)),
        "w2_v2": init(ks[4], (I, Rs)), "w2_u2": init(ks[5], (Rs, H)),
        # per-expert delta low-rank factors
        "v1": init(ks[6], (H, Rd)), "u1": init(ks[7], (Rd, I)),
        "v3": init(ks[8], (H, Rd)), "u3": init(ks[9], (Rd, I)),
        "v2": init(ks[10], (I, Rd)), "u2": init(ks[11], (Rd, H)),
    }


if __name__ == "__main__":
    # Small config consistent with the module:
    #   hidden_size=192, intermediate_size=384, hidden_act='silu',
    #   share_ratio=1.0, delta_ratio=1.0
    #   -> share_low_rank = delta_low_rank = int(384*192/(384+192)) = 128.
    B, S, H, I = 2, 128, 192, 384
    share_ratio, delta_ratio = 1.0, 1.0
    Rs = int(I * H * share_ratio / (I + H))   # 128
    Rd = int(I * H * delta_ratio / (I + H))   # 128

    key = jax.random.PRNGKey(0)
    pkey, xkey = jax.random.split(key)
    params = init_params(pkey, H, I, Rs, Rd)
    hidden_states = jax.random.normal(xkey, (B, S, H), jnp.float32).astype(jnp.bfloat16)

    fwd = jax.jit(functools.partial(share_svd_expert_forward, tm=128, ti=128))
    out = fwd(hidden_states, params)
    ref = reference_forward(hidden_states, params)
    jax.block_until_ready((out, ref))

    assert out.shape == (B, S, H) and out.dtype == jnp.bfloat16
    max_err = float(jnp.max(jnp.abs(out.astype(jnp.float32) - ref.astype(jnp.float32))))
    assert max_err < 0.1, f"max abs error vs reference: {max_err}"
    print("KERNEL_OK")
</pallas_src>

<mosaic_0001>
module attributes {stable_mosaic.version = 11 : i64} {
  func.func @_expert_kernel(%arg0: i32, %arg1: i32, %arg2: memref<128x192xbf16, #tpu.memory_space<vmem>>, %arg3: memref<192x512xbf16, #tpu.memory_space<vmem>>, %arg4: memref<256x128xbf16, #tpu.memory_space<vmem>>, %arg5: memref<256x128xbf16, #tpu.memory_space<vmem>>, %arg6: memref<128x256xbf16, #tpu.memory_space<vmem>>, %arg7: memref<256x192xbf16, #tpu.memory_space<vmem>>, %arg8: memref<128x192xbf16, #tpu.memory_space<vmem>>, %arg9: memref<128x512xbf16, #tpu.memory_space<vmem>>, %arg10: memref<128x256xf32, #tpu.memory_space<vmem>>) attributes {dimension_semantics = [#tpu.dimension_semantics<parallel>, #tpu.dimension_semantics<arbitrary>], iteration_bounds = array<i64: 2, 3>, scalar_prefetch = 0 : i64, scratch_operands = 2 : i64, tpu.core_type = #tpu.core_type<tc>, window_params = [{transform_indices = @transform_0, window_bounds = array<i64: 128, 192>}, {pipeline_mode = #tpu.pipeline_mode<synchronous>, transform_indices = @transform_1, window_bounds = array<i64: 192, 512>}, {transform_indices = @transform_2, window_bounds = array<i64: 256, 128>}, {transform_indices = @transform_3, window_bounds = array<i64: 256, 128>}, {transform_indices = @transform_4, window_bounds = array<i64: 128, 256>}, {pipeline_mode = #tpu.pipeline_mode<synchronous>, transform_indices = @transform_5, window_bounds = array<i64: 256, 192>}, {transform_indices = @transform_6, window_bounds = array<i64: 128, 192>}]} {
    %c0_i32 = arith.constant 0 : i32
    %0 = arith.cmpi eq, %arg1, %c0_i32 : i32
    %1 = arith.extui %0 : i1 to i32
    %c0_i32_0 = arith.constant 0 : i32
    %2 = arith.cmpi ne, %1, %c0_i32_0 : i32
    scf.if %2 {
      %c0_17 = arith.constant 0 : index
      %c0_18 = arith.constant 0 : index
      %25 = vector.load %arg2[%c0_17, %c0_18] : memref<128x192xbf16, #tpu.memory_space<vmem>>, vector<128x192xbf16>
      %c0_19 = arith.constant 0 : index
      %c0_20 = arith.constant 0 : index
      %26 = vector.load %arg3[%c0_19, %c0_20] : memref<192x512xbf16, #tpu.memory_space<vmem>>, vector<192x512xbf16>
      %cst_21 = arith.constant dense<0.000000e+00> : vector<128x512xf32>
      %27 = tpu.matmul %25, %26, %cst_21 {dimension_numbers = #tpu.dot_dimension_numbers<[1], [0], [0], [1], [0, 0, 1, 1], [], []>} : vector<128x192xbf16>, vector<192x512xbf16>, vector<128x512xf32> -> vector<128x512xf32>
      %28 = arith.truncf %27 : vector<128x512xf32> to vector<128x512xbf16>
      %c0_22 = arith.constant 0 : index
      %c0_23 = arith.constant 0 : index
      %29 = vector.load %arg9[%c0_22, %c0_23] : memref<128x512xbf16, #tpu.memory_space<vmem>>, vector<128x512xbf16>
      tpu.vector_store %arg9[%c0_22, %c0_23], %28 {strides = array<i32>} : memref<128x512xbf16, #tpu.memory_space<vmem>>, vector<128x512xbf16>,
      %cst_24 = arith.constant 0.000000e+00 : f32
      %30 = vector.broadcast %cst_24 : f32 to vector<128x256xf32>
      %c0_25 = arith.constant 0 : index
      %c0_26 = arith.constant 0 : index
      %31 = vector.load %arg10[%c0_25, %c0_26] : memref<128x256xf32, #tpu.memory_space<vmem>>, vector<128x256xf32>
      tpu.vector_store %arg10[%c0_25, %c0_26], %30 {strides = array<i32>} : memref<128x256xf32, #tpu.memory_space<vmem>>, vector<128x256xf32>,
    } else {
    }
    %c0 = arith.constant 0 : index
    %c0_1 = arith.constant 0 : index
    %3 = vector.load %arg9[%c0, %c0_1] : memref<128x512xbf16, #tpu.memory_space<vmem>>, vector<128x256xbf16>
    %c0_2 = arith.constant 0 : index
    %c0_3 = arith.constant 0 : index
    %4 = vector.load %arg4[%c0_2, %c0_3] : memref<256x128xbf16, #tpu.memory_space<vmem>>, vector<256x128xbf16>
    %cst = arith.constant dense<0.000000e+00> : vector<128x128xf32>
    %5 = tpu.matmul %3, %4, %cst {dimension_numbers = #tpu.dot_dimension_numbers<[1], [0], [0], [1], [0, 0, 1, 1], [], []>} : vector<128x256xbf16>, vector<256x128xbf16>, vector<128x128xf32> -> vector<128x128xf32>
    %c0_4 = arith.constant 0 : index
    %c256 = arith.constant 256 : index
    %6 = vector.load %arg9[%c0_4, %c256] : memref<128x512xbf16, #tpu.memory_space<vmem>>, vector<128x256xbf16>
    %c0_5 = arith.constant 0 : index
    %c0_6 = arith.constant 0 : index
    %7 = vector.load %arg5[%c0_5, %c0_6] : memref<256x128xbf16, #tpu.memory_space<vmem>>, vector<256x128xbf16>
    %cst_7 = arith.constant dense<0.000000e+00> : vector<128x128xf32>
    %8 = tpu.matmul %6, %7, %cst_7 {dimension_numbers = #tpu.dot_dimension_numbers<[1], [0], [0], [1], [0, 0, 1, 1], [], []>} : vector<128x256xbf16>, vector<256x128xbf16>, vector<128x128xf32> -> vector<128x128xf32>
    %9 = arith.negf %5 : vector<128x128xf32>
    %10 = math.exp %9 : vector<128x128xf32>
    %cst_8 = arith.constant 1.000000e+00 : f32
    %11 = vector.broadcast %cst_8 : f32 to vector<128x128xf32>
    %12 = arith.addf %11, %10 : vector<128x128xf32>
    %13 = arith.divf %11, %12 : vector<128x128xf32>
    %14 = arith.mulf %5, %13 : vector<128x128xf32>
    %15 = arith.mulf %14, %8 : vector<128x128xf32>
    %16 = arith.truncf %15 : vector<128x128xf32> to vector<128x128xbf16>
    %c0_9 = arith.constant 0 : index
    %c0_10 = arith.constant 0 : index
    %17 = vector.load %arg10[%c0_9, %c0_10] : memref<128x256xf32, #tpu.memory_space<vmem>>, vector<128x256xf32>
    %c0_11 = arith.constant 0 : index
    %c0_12 = arith.constant 0 : index
    %18 = vector.load %arg6[%c0_11, %c0_12] : memref<128x256xbf16, #tpu.memory_space<vmem>>, vector<128x256xbf16>
    %cst_13 = arith.constant dense<0.000000e+00> : vector<128x256xf32>
    %19 = tpu.matmul %16, %18, %cst_13 {dimension_numbers = #tpu.dot_dimension_numbers<[1], [0], [0], [1], [0, 0, 1, 1], [], []>} : vector<128x128xbf16>, vector<128x256xbf16>, vector<128x256xf32> -> vector<128x256xf32>
    %20 = arith.addf %17, %19 : vector<128x256xf32>
    %c0_14 = arith.constant 0 : index
    %c0_15 = arith.constant 0 : index
    %21 = vector.load %arg10[%c0_14, %c0_15] : memref<128x256xf32, #tpu.memory_space<vmem>>, vector<128x256xf32>
    tpu.vector_store %arg10[%c0_14, %c0_15], %20 {strides = array<i32>} : memref<128x256xf32, #tpu.memory_space<vmem>>, vector<128x256xf32>,
    %c2_i32 = arith.constant 2 : i32
    %22 = arith.cmpi eq, %arg1, %c2_i32 : i32
    %23 = arith.extui %22 : i1 to i32
    %c0_i32_16 = arith.constant 0 : i32
    %24 = arith.cmpi ne, %23, %c0_i32_16 : i32
    scf.if %24 {
      %c0_17 = arith.constant 0 : index
      %c0_18 = arith.constant 0 : index
      %25 = vector.load %arg10[%c0_17, %c0_18] : memref<128x256xf32, #tpu.memory_space<vmem>>, vector<128x256xf32>
      %26 = arith.truncf %25 : vector<128x256xf32> to vector<128x256xbf16>
      %c0_19 = arith.constant 0 : index
      %c0_20 = arith.constant 0 : index
      %27 = vector.load %arg7[%c0_19, %c0_20] : memref<256x192xbf16, #tpu.memory_space<vmem>>, vector<256x192xbf16>
      %cst_21 = arith.constant dense<0.000000e+00> : vector<128x192xf32>
      %28 = tpu.matmul %26, %27, %cst_21 {dimension_numbers = #tpu.dot_dimension_numbers<[1], [0], [0], [1], [0, 0, 1, 1], [], []>} : vector<128x256xbf16>, vector<256x192xbf16>, vector<128x192xf32> -> vector<128x192xf32>
      %29 = arith.truncf %28 : vector<128x192xf32> to vector<128x192xbf16>
      %c0_22 = arith.constant 0 : index
      %c0_23 = arith.constant 0 : index
      %30 = vector.load %arg8[%c0_22, %c0_23] : memref<128x192xbf16, #tpu.memory_space<vmem>>, vector<128x192xbf16>
      tpu.vector_store %arg8[%c0_22, %c0_23], %29 {strides = array<i32>} : memref<128x192xbf16, #tpu.memory_space<vmem>>, vector<128x192xbf16>,
    } else {
    }
    return
  }
  func.func @transform_0(%arg0: i32, %arg1: i32) -> (i32, i32) {
    %c0_i32 = arith.constant 0 : i32
    %c0_i32_0 = arith.constant 0 : i32
    return %arg0, %c0_i32 : i32, i32
  }
  func.func @transform_1(%arg0: i32, %arg1: i32) -> (i32, i32) {
    %c0_i32 = arith.constant 0 : i32
    %c0_i32_0 = arith.constant 0 : i32
    %c0_i32_1 = arith.constant 0 : i32
    return %c0_i32, %c0_i32_0 : i32, i32
  }
  func.func @transform_2(%arg0: i32, %arg1: i32) -> (i32, i32) {
    %c0_i32 = arith.constant 0 : i32
    %c0_i32_0 = arith.constant 0 : i32
    return %c0_i32, %arg1 : i32, i32
  }
  func.func @transform_3(%arg0: i32, %arg1: i32) -> (i32, i32) {
    %c0_i32 = arith.constant 0 : i32
    %c0_i32_0 = arith.constant 0 : i32
    return %c0_i32, %arg1 : i32, i32
  }
  func.func @transform_4(%arg0: i32, %arg1: i32) -> (i32, i32) {
    %c0_i32 = arith.constant 0 : i32
    %c0_i32_0 = arith.constant 0 : i32
    return %arg1, %c0_i32 : i32, i32
  }
  func.func @transform_5(%arg0: i32, %arg1: i32) -> (i32, i32) {
    %c0_i32 = arith.constant 0 : i32
    %c0_i32_0 = arith.constant 0 : i32
    %c0_i32_1 = arith.constant 0 : i32
    return %c0_i32, %c0_i32_0 : i32, i32
  }
  func.func @transform_6(%arg0: i32, %arg1: i32) -> (i32, i32) {
    %c0_i32 = arith.constant 0 : i32
    %c0_i32_0 = arith.constant 0 : i32
    return %arg0, %c0_i32 : i32, i32
  }
}

</mosaic_0001>

<llo_original>
// kernel: share_svd_expert_forward.1
$region0: #{share_svd_expert_forward.1}
  #allocation0 [shape = 'u32[]', space=smem, size = 0x4, offset = 0x4, fixed_abs, tag = 'smem constant byte address 0x4 - core index']
  #allocation1 [shape = 'u32[144,128]{1,0:T(1,128)}', space=vmem, size = 0x12000, scoped, tag = 'internal scratch']
  #allocation2 [shape = 'bf16[128,512]{1,0:T(16,128)(2,1)}', space=vmem, size = 0x20000, scoped, tag = 'scratch operand']
  #allocation3 [shape = 'f32[128,256]{1,0:T(8,128)}', space=vmem, size = 0x20000, scoped, tag = 'scratch operand']
  %s0 = inlined_call_operand.vmem [shape: bf16[256,192], index: 0, kind: input, shape index: {}]
  %s1 = inlined_call_operand.vmem [shape: bf16[192,512], index: 1, kind: input, shape index: {}]
  %s2 = inlined_call_operand.vmem [shape: bf16[256,384], index: 2, kind: input, shape index: {}]
  %s3 = inlined_call_operand.vmem [shape: bf16[256,384], index: 3, kind: input, shape index: {}]
  %s4 = inlined_call_operand.vmem [shape: bf16[384,256], index: 4, kind: input, shape index: {}]
  %s5 = inlined_call_operand.vmem [shape: bf16[256,192], index: 5, kind: input, shape index: {}]
  %s6 = inlined_call_operand.vmem [shape: bf16[256,192], index: 6, kind: output, shape index: {}]
  %s7 = sld [smem:[#allocation0]]
  $region147: #{share_svd_expert_forward.1} parent=0
    _
  %s9 = ssub.s32 1, %s7
  %s10 = scalar_select 0, %s9, %s7
  $region1: #{share_svd_expert_forward.1} parent=0
    #allocation4 [shape = 'u8[131072]{0}', space=vmem, size = 0x20000, scoped, tag = 'input window, operand 2']
    #allocation5 [shape = 'u8[131072]{0}', space=vmem, size = 0x20000, scoped, tag = 'input window, operand 3']
    loop: start=0, step=1, limit=8
    $region2: #{share_svd_expert_forward.1} parent=1 // loop_pre_header
      _
    $region3: #{share_svd_expert_forward.1} parent=1 // loop_header
      %s12 = sphi 0, %s16
      %p13 = scmp.ge.s32.totalorder %s12, 8
      %s19 = sphi 0, %s31
      %s20 = sphi 0, %s27
      %s21 = sphi 0, %s19
      %s22 = sphi 0, %s20
      %s23 = sphi 0, %s21
      %s24 = sphi 0, %s22
      %s34 = sphi 0, %s36
      %s37 = sphi 0, %s34
      %s38 = sphi 0, %s37
      %s54 = sphi 0, %s38
      %s58 = sphi 0, %s58
      %s60 = sphi 0, %s58
      %s61 = sphi 0, %s60
      %s75 = sphi 0, %s61
      %s81 = sphi 0, %s83
      %s84 = sphi 0, %s81
      %s85 = sphi 0, %s84
      %s101 = sphi 0, %s85
      %s107 = sphi 0, %s109
      %s110 = sphi 0, %s107
      %s111 = sphi 0, %s110
      %s127 = sphi 0, %s111
      %s133 = sphi 0, %s135
      %s136 = sphi 0, %s133
      %s137 = sphi 0, %s136
      %s153 = sphi 0, %s137
      %s157 = sphi 0, %s157
      %s159 = sphi 0, %s157
      %s160 = sphi 0, %s159
      %s174 = sphi 0, %s160
      %s180 = sphi 0, %s182
      %s183 = sphi 0, %s180
      %s184 = sphi 0, %s183
      %s200 = sphi 0, %s184
    $region4: #{share_svd_expert_forward.1} parent=1 // loop_header_branch
      %15 = sbr.rel (%p13) target = $region8
    $region5: #{share_svd_expert_forward.1} parent=1 // loop_body
      %s17 = ssub.s32 %s12, 1
      %s18 = ssub.s32 %s12, 2
      %s25 = sadd.s32 1, %s20
      %p26 = scmp.ge.s32.totalorder %s25, 3
      %s27 = scalar_select %p26, 0, %s25
      %s28 = sadd.s32 1, %s19
      %s29 = scalar_select %p26, %s28, %s19
      %p30 = scmp.ge.s32.totalorder %s29, 2
      %s31 = scalar_select %p30, 0, %s29
      %s32 = ssub.s32 %s19, %s31
      %p33 = scmp.eq.s32.totalorder %s32, 0
      %s35 = sadd.s32 %s34, 1
      %s36 = scalar_select %p33, %s34, %s35
      %p39 = pneg %p33
      %p40 = scmp.eq.s32.totalorder %s12, 5
      %p41 = por %p39, %p40
      %p42 = scmp.ne.s32.totalorder %s34, %s37
      %p43 = scmp.eq.s32.totalorder %s12, 0
      %p44 = por %p42, %p43
      %p45 = scmp.ne.s32.totalorder %s34, %s37
      %p46 = scmp.eq.s32.totalorder %s17, 5
      %p47 = por %p45, %p46
      %p48 = scmp.ne.s32.totalorder %s37, %s38
      %p49 = scmp.eq.s32.totalorder %s17, 0
      %p50 = por %p48, %p49
      %p51 = scmp.ne.s32.totalorder %s37, %s38
      %p52 = scmp.eq.s32.totalorder %s18, 5
      %p53 = por %p51, %p52
      %p55 = scmp.ne.s32.totalorder %s38, %s54
      %p56 = scmp.eq.s32.totalorder %s18, 0
      %p57 = por %p55, %p56
      %s59 = sadd.s32 %s58, 1
      %p62 = scmp.eq.s32.totalorder %s12, 5
      %p63 = scmp.ne.s32.totalorder %s58, %s60
      %p64 = scmp.eq.s32.totalorder %s12, 0
      %p65 = por %p63, %p64
      %p66 = scmp.ne.s32.totalorder %s58, %s60
      %p67 = scmp.eq.s32.totalorder %s17, 5
      %p68 = por %p66, %p67
      %p69 = scmp.ne.s32.totalorder %s60, %s61
      %p70 = scmp.eq.s32.totalorder %s17, 0
      %p71 = por %p69, %p70
      %p72 = scmp.ne.s32.totalorder %s60, %s61
      %p73 = scmp.eq.s32.totalorder %s18, 5
      %p74 = por %p72, %p73
      %p76 = scmp.ne.s32.totalorder %s61, %s75
      %p77 = scmp.eq.s32.totalorder %s18, 0
      %p78 = por %p76, %p77
      %s79 = ssub.s32 %s20, %s27
      %p80 = scmp.eq.s32.totalorder %s79, 0
      %s82 = sadd.s32 %s81, 1
      %s83 = scalar_select %p80, %s81, %s82
      %p86 = pneg %p80
      %p87 = scmp.eq.s32.totalorder %s12, 5
      %p88 = por %p86, %p87
      %p89 = scmp.ne.s32.totalorder %s81, %s84
      %p90 = scmp.eq.s32.totalorder %s12, 0
      %p91 = por %p89, %p90
      %p92 = scmp.ne.s32.totalorder %s81, %s84
      %p93 = scmp.eq.s32.totalorder %s17, 5
      %p94 = por %p92, %p93
      %p95 = scmp.ne.s32.totalorder %s84, %s85
      %p96 = scmp.eq.s32.totalorder %s17, 0
      %p97 = por %p95, %p96
      %p98 = scmp.ne.s32.totalorder %s84, %s85
      %p99 = scmp.eq.s32.totalorder %s18, 5
      %p100 = por %p98, %p99
      %p102 = scmp.ne.s32.totalorder %s85, %s101
      %p103 = scmp.eq.s32.totalorder %s18, 0
      %p104 = por %p102, %p103
      %s105 = ssub.s32 %s20, %s27
      %p106 = scmp.eq.s32.totalorder %s105, 0
      %s108 = sadd.s32 %s107, 1
      %s109 = scalar_select %p106, %s107, %s108
      %p112 = pneg %p106
      %p113 = scmp.eq.s32.totalorder %s12, 5
      %p114 = por %p112, %p113
      %p115 = scmp.ne.s32.totalorder %s107, %s110
      %p116 = scmp.eq.s32.totalorder %s12, 0
      %p117 = por %p115, %p116
      %p118 = scmp.ne.s32.totalorder %s107, %s110
      %p119 = scmp.eq.s32.totalorder %s17, 5
      %p120 = por %p118, %p119
      %p121 = scmp.ne.s32.totalorder %s110, %s111
      %p122 = scmp.eq.s32.totalorder %s17, 0
      %p123 = por %p121, %p122
      %p124 = scmp.ne.s32.totalorder %s110, %s111
      %p125 = scmp.eq.s32.totalorder %s18, 5
      %p126 = por %p124, %p125
      %p128 = scmp.ne.s32.totalorder %s111, %s127
      %p129 = scmp.eq.s32.totalorder %s18, 0
      %p130 = por %p128, %p129
      %s131 = ssub.s32 %s20, %s27
      %p132 = scmp.eq.s32.totalorder %s131, 0
      %s134 = sadd.s32 %s133, 1
      %s135 = scalar_select %p132, %s133, %s134
      %p138 = pneg %p132
      %p139 = scmp.eq.s32.totalorder %s12, 5
      %p140 = por %p138, %p139
      %p141 = scmp.ne.s32.totalorder %s133, %s136
      %p142 = scmp.eq.s32.totalorder %s12, 0
      %p143 = por %p141, %p142
      %p144 = scmp.ne.s32.totalorder %s133, %s136
      %p145 = scmp.eq.s32.totalorder %s17, 5
      %p146 = por %p144, %p145
      %p147 = scmp.ne.s32.totalorder %s136, %s137
      %p148 = scmp.eq.s32.totalorder %s17, 0
      %p149 = por %p147, %p148
      %p150 = scmp.ne.s32.totalorder %s136, %s137
      %p151 = scmp.eq.s32.totalorder %s18, 5
      %p152 = por %p150, %p151
      %p154 = scmp.ne.s32.totalorder %s137, %s153
      %p155 = scmp.eq.s32.totalorder %s18, 0
      %p156 = por %p154, %p155
      %s158 = sadd.s32 %s157, 1
      %p161 = scmp.eq.s32.totalorder %s12, 5
      %p162 = scmp.ne.s32.totalorder %s157, %s159
      %p163 = scmp.eq.s32.totalorder %s12, 0
      %p164 = por %p162, %p163
      %p165 = scmp.ne.s32.totalorder %s157, %s159
      %p166 = scmp.eq.s32.totalorder %s17, 5
      %p167 = por %p165, %p166
      %p168 = scmp.ne.s32.totalorder %s159, %s160
      %p169 = scmp.eq.s32.totalorder %s17, 0
      %p170 = por %p168, %p169
      %p171 = scmp.ne.s32.totalorder %s159, %s160
      %p172 = scmp.eq.s32.totalorder %s18, 5
      %p173 = por %p171, %p172
      %p175 = scmp.ne.s32.totalorder %s160, %s174
      %p176 = scmp.eq.s32.totalorder %s18, 0
      %p177 = por %p175, %p176
      %s178 = ssub.s32 %s19, %s31
      %p179 = scmp.eq.s32.totalorder %s178, 0
      %s181 = sadd.s32 %s180, 1
      %s182 = scalar_select %p179, %s180, %s181
      %p185 = pneg %p179
      %p186 = scmp.eq.s32.totalorder %s12, 5
      %p187 = por %p185, %p186
      %p188 = scmp.ne.s32.totalorder %s180, %s183
      %p189 = scmp.eq.s32.totalorder %s12, 0
      %p190 = por %p188, %p189
      %p191 = scmp.ne.s32.totalorder %s180, %s183
      %p192 = scmp.eq.s32.totalorder %s17, 5
      %p193 = por %p191, %p192
      %p194 = scmp.ne.s32.totalorder %s183, %s184
      %p195 = scmp.eq.s32.totalorder %s17, 0
      %p196 = por %p194, %p195
      %p197 = scmp.ne.s32.totalorder %s183, %s184
      %p198 = scmp.eq.s32.totalorder %s18, 5
      %p199 = por %p197, %p198
      %p201 = scmp.ne.s32.totalorder %s184, %s200
      %p202 = scmp.eq.s32.totalorder %s18, 0
      %p203 = por %p201, %p202
      %p204 = scmp.le.s32.totalorder 1, %s12
      %p205 = scmp.lt.s32.totalorder %s12, 7
      %p206 = pnand %p204, %p205
      %p207 = pneg %p206
      // Predicated region
      $region9: #{share_svd_expert_forward.1} parent=5 // pred_check
        _
      $region10: #{share_svd_expert_forward.1} parent=5 // pred_check_branch
        %209 = sbr.rel (%p206) target = $region12
      $region11: #{share_svd_expert_forward.1} parent=5 // pred_region
        %s210 = ssub.s32 %s12, 1
        // Predicated region
        $region13: #{share_svd_expert_forward.1} parent=11 // pred_check
          %p211 = pneg %p71
        $region14: #{share_svd_expert_forward.1} parent=11 // pred_check_branch
          %213 = sbr.rel (%p211) target = $region16
        $region15: #{share_svd_expert_forward.1} parent=11 // pred_region
          _
        $region16: #{share_svd_expert_forward.1} parent=11 // pred_fallthru
          _
        // Predicated region
        $region17: #{share_svd_expert_forward.1} parent=11 // pred_check
          %p214 = pneg %p170
        $region18: #{share_svd_expert_forward.1} parent=11 // pred_check_branch
          %216 = sbr.rel (%p214) target = $region20
        $region19: #{share_svd_expert_forward.1} parent=11 // pred_region
          _
        $region20: #{share_svd_expert_forward.1} parent=11 // pred_fallthru
          _
      $region12: #{share_svd_expert_forward.1} parent=5 // pred_fallthru
        _
      %p217 = scmp.lt.s32.totalorder %s12, 6
      // Predicated region
      $region21: #{share_svd_expert_forward.1} parent=5 // pred_check
        %p218 = pneg %p217
      $region22: #{share_svd_expert_forward.1} parent=5 // pred_check_branch
        %220 = sbr.rel (%p218) target = $region24
      $region23: #{share_svd_expert_forward.1} parent=5 // pred_region
        // Predicated region
        $region25: #{share_svd_expert_forward.1} parent=23 // pred_check
          %p221 = pneg %p44
        $region26: #{share_svd_expert_forward.1} parent=23 // pred_check_branch
          %223 = sbr.rel (%p221) target = $region28
        $region27: #{share_svd_expert_forward.1} parent=23 // pred_region
          %s224 = smul.u32 16, %s19
          %p225 = scmp.lt.s32.totalorder %s224, 31
          %s226 = scalar_select %p225, %s224, 31
          %s227 = smul.addr %s226, 2
          %s228 = smul.addr %s227, 4
          %s229 = scalar_lea.vmem %s0, %s228
          %s230 = smul.u32 16, %s19
        $region28: #{share_svd_expert_forward.1} parent=23 // pred_fallthru
          _
        // Predicated region
        $region29: #{share_svd_expert_forward.1} parent=23 // pred_check
          %p231 = pneg %p91
        $region30: #{share_svd_expert_forward.1} parent=23 // pred_check_branch
          %233 = sbr.rel (%p231) target = $region32
        $region31: #{share_svd_expert_forward.1} parent=23 // pred_region
          %s234 = sand.u32 %s81, 1
          %s235 = sand.u32 %s81, 1
          %s236 = smul.addr %s235, 128
          %s237 = scalar_lea.vmem [#allocation4], %s236
          %s238 = smul.addr %s20, 4
          %s239 = scalar_lea.vmem %s2, %s238
          // Predicated region
          $region33: #{share_svd_expert_forward.1} parent=31 // pred_check
            _
          $region34: #{share_svd_expert_forward.1} parent=31 // pred_check_branch
            %241 = sbr.rel (0) target = $region36
          $region35: #{share_svd_expert_forward.1} parent=31 // pred_region
            // Predicated region
            $region37: #{share_svd_expert_forward.1} parent=35 // pred_check
              _
            $region38: #{share_svd_expert_forward.1} parent=35 // pred_check_branch
              %243 = sbr.rel target = $region40
            $region39: #{share_svd_expert_forward.1} parent=35 // pred_region
              // Predicated region
              $region52: #{share_svd_expert_forward.1} parent=39 // pred_check
                _
              $region53: #{share_svd_expert_forward.1} parent=39 // pred_check_branch
                %320 = sbr.rel (0) target = $region55
              $region54: #{share_svd_expert_forward.1} parent=39 // pred_region
                loop: start=0, step=1, limit=1
                $region56: #{share_svd_expert_forward.1} parent=54 // loop_pre_header
                  _
                $region57: #{share_svd_expert_forward.1} parent=54 // loop_header
                  %s322 = sphi 0, %s326
                  %p323 = scmp.ge.s32.totalorder %s322, 1
                  %s327 = sphi %s239, %s239
                  %s328 = sphi %s237, %s237
                $region58: #{share_svd_expert_forward.1} parent=54 // loop_header_branch
                  %325 = sbr.rel (%p323) target = $region62
                $region59: #{share_svd_expert_forward.1} parent=54 // loop_body
                  _
                $region60: #{share_svd_expert_forward.1} parent=54 // loop_footer
                  %s326 = sadd.s32 1, %s322
                $region61: #{share_svd_expert_forward.1} parent=54 // loop_footer_branch
                  %321 = sbr.rel target = $region57
                $region62: #{share_svd_expert_forward.1} parent=54 // loop_exit
                  _
                loop: start=0, step=1, limit=1
                $region63: #{share_svd_expert_forward.1} parent=54 // loop_pre_header
                  _
                $region64: #{share_svd_expert_forward.1} parent=54 // loop_header
                  %s331 = sphi 0, %s335
                  %p332 = scmp.ge.s32.totalorder %s331, 1
                  %s336 = sphi %s239, %s239
                  %s337 = sphi %s237, %s237
                $region65: #{share_svd_expert_forward.1} parent=54 // loop_header_branch
                  %334 = sbr.rel (%p332) target = $region69
                $region66: #{share_svd_expert_forward.1} parent=54 // loop_body
                  %v338 = vld [vmem:[%s336] sm:$0xf]
                  %339 = vst [vmem:[%s337] sm:$0xf] %v338
                  %v340 = vld [vmem:[%s336 + $0xc] sm:$0xf]
                  %341 = vst [vmem:[%s337 + $0x4] sm:$0xf] %v340
                  %v342 = vld [vmem:[%s336 + $0x18] sm:$0xf]
                  %343 = vst [vmem:[%s337 + $0x8] sm:$0xf] %v342
                  %v344 = vld [vmem:[%s336 + $0x24] sm:$0xf]
                  %345 = vst [vmem:[%s337 + $0xc] sm:$0xf] %v344
                  %v346 = vld [vmem:[%s336 + $0x30] sm:$0xf]
                  %347 = vst [vmem:[%s337 + $0x10] sm:$0xf] %v346
                  %v348 = vld [vmem:[%s336 + $0x3c] sm:$0xf]
                  %349 = vst [vmem:[%s337 + $0x14] sm:$0xf] %v348
                  %v350 = vld [vmem:[%s336 + $0x48] sm:$0xf]
                  %351 = vst [vmem:[%s337 + $0x18] sm:$0xf] %v350
                  %v352 = vld [vmem:[%s336 + $0x54] sm:$0xf]
                  %353 = vst [vmem:[%s337 + $0x1c] sm:$0xf] %v352
                  %v354 = vld [vmem:[%s336 + $0x60] sm:$0xf]
                  %355 = vst [vmem:[%s337 + $0x20] sm:$0xf] %v354
                  %v356 = vld [vmem:[%s336 + $0x6c] sm:$0xf]
                  %357 = vst [vmem:[%s337 + $0x24] sm:$0xf] %v356
                  %v358 = vld [vmem:[%s336 + $0x78] sm:$0xf]
                  %359 = vst [vmem:[%s337 + $0x28] sm:$0xf] %v358
                  %v360 = vld [vmem:[%s336 + $0x84] sm:$0xf]
                  %361 = vst [vmem:[%s337 + $0x2c] sm:$0xf] %v360
                  %v362 = vld [vmem:[%s336 + $0x90] sm:$0xf]
                  %363 = vst [vmem:[%s337 + $0x30] sm:$0xf] %v362
                  %v364 = vld [vmem:[%s336 + $0x9c] sm:$0xf]
                  %365 = vst [vmem:[%s337 + $0x34] sm:$0xf] %v364
                  %v366 = vld [vmem:[%s336 + $0xa8] sm:$0xf]
                  %367 = vst [vmem:[%s337 + $0x38] sm:$0xf] %v366
                  %v368 = vld [vmem:[%s336 + $0xb4] sm:$0xf]
                  %369 = vst [vmem:[%s337 + $0x3c] sm:$0xf] %v368
                  %v370 = vld [vmem:[%s336 + $0xc0] sm:$0xf]
                  %371 = vst [vmem:[%s337 + $0x40] sm:$0xf] %v370
                  %v372 = vld [vmem:[%s336 + $0xcc] sm:$0xf]
                  %373 = vst [vmem:[%s337 + $0x44] sm:$0xf] %v372
                  %v374 = vld [vmem:[%s336 + $0xd8] sm:$0xf]
                  %375 = vst [vmem:[%s337 + $0x48] sm:$0xf] %v374
                  %v376 = vld [vmem:[%s336 + $0xe4] sm:$0xf]
                  %377 = vst [vmem:[%s337 + $0x4c] sm:$0xf] %v376
                  %v378 = vld [vmem:[%s336 + $0xf0] sm:$0xf]
                  %379 = vst [vmem:[%s337 + $0x50] sm:$0xf] %v378
                  %v380 = vld [vmem:[%s336 + $0xfc] sm:$0xf]
                  %381 = vst [vmem:[%s337 + $0x54] sm:$0xf] %v380
                  %v382 = vld [vmem:[%s336 + $0x108] sm:$0xf]
                  %383 = vst [vmem:[%s337 + $0x58] sm:$0xf] %v382
                  %v384 = vld [vmem:[%s336 + $0x114] sm:$0xf]
                  %385 = vst [vmem:[%s337 + $0x5c] sm:$0xf] %v384
                  %v386 = vld [vmem:[%s336 + $0x120] sm:$0xf]
                  %387 = vst [vmem:[%s337 + $0x60] sm:$0xf] %v386
                  %v388 = vld [vmem:[%s336 + $0x12c] sm:$0xf]
                  %389 = vst [vmem:[%s337 + $0x64] sm:$0xf] %v388
                  %v390 = vld [vmem:[%s336 + $0x138] sm:$0xf]
                  %391 = vst [vmem:[%s337 + $0x68] sm:$0xf] %v390
                  %v392 = vld [vmem:[%s336 + $0x144] sm:$0xf]
                  %393 = vst [vmem:[%s337 + $0x6c] sm:$0xf] %v392
                  %v394 = vld [vmem:[%s336 + $0x150] sm:$0xf]
                  %395 = vst [vmem:[%s337 + $0x70] sm:$0xf] %v394
                  %v396 = vld [vmem:[%s336 + $0x15c] sm:$0xf]
                  %397 = vst [vmem:[%s337 + $0x74] sm:$0xf] %v396
                  %v398 = vld [vmem:[%s336 + $0x168] sm:$0xf]
                  %399 = vst [vmem:[%s337 + $0x78] sm:$0xf] %v398
                  %v400 = vld [vmem:[%s336 + $0x174] sm:$0xf]
                  %401 = vst [vmem:[%s337 + $0x7c] sm:$0xf] %v400
                $region67: #{share_svd_expert_forward.1} parent=54 // loop_footer
                  %s335 = sadd.s32 1, %s331
                $region68: #{share_svd_expert_forward.1} parent=54 // loop_footer_branch
                  %330 = sbr.rel target = $region64
                $region69: #{share_svd_expert_forward.1} parent=54 // loop_exit
                  _
              $region55: #{share_svd_expert_forward.1} parent=39 // pred_fallthru
                _
            $region40: #{share_svd_expert_forward.1} parent=35 // pred_fallthru
              _
            // Predicated region
            $region41: #{share_svd_expert_forward.1} parent=35 // pred_check
              _
            $region42: #{share_svd_expert_forward.1} parent=35 // pred_check_branch
              %245 = sbr.rel (0) target = $region44
            $region43: #{share_svd_expert_forward.1} parent=35 // pred_region
              loop: start=0, step=1, limit=1
              $region45: #{share_svd_expert_forward.1} parent=43 // loop_pre_header
                _
              $region46: #{share_svd_expert_forward.1} parent=43 // loop_header
                %s248 = sphi 0, %s252
                %p249 = scmp.ge.s32.totalorder %s248, 1
                %s253 = sphi %s239, %s239
                %s254 = sphi %s237, %s237
              $region47: #{share_svd_expert_forward.1} parent=43 // loop_header_branch
                %251 = sbr.rel (%p249) target = $region51
              $region48: #{share_svd_expert_forward.1} parent=43 // loop_body
                %v255 = vld [vmem:[%s253] sm:$0xf]
                %256 = vst [vmem:[%s254] sm:$0xf] %v255
                %v257 = vld [vmem:[%s253 + $0xc] sm:$0xf]
                %258 = vst [vmem:[%s254 + $0x4] sm:$0xf] %v257
                %v259 = vld [vmem:[%s253 + $0x18] sm:$0xf]
                %260 = vst [vmem:[%s254 + $0x8] sm:$0xf] %v259
                %v261 = vld [vmem:[%s253 + $0x24] sm:$0xf]
                %262 = vst [vmem:[%s254 + $0xc] sm:$0xf] %v261
                %v263 = vld [vmem:[%s253 + $0x30] sm:$0xf]
                %264 = vst [vmem:[%s254 + $0x10] sm:$0xf] %v263
                %v265 = vld [vmem:[%s253 + $0x3c] sm:$0xf]
                %266 = vst [vmem:[%s254 + $0x14] sm:$0xf] %v265
                %v267 = vld [vmem:[%s253 + $0x48] sm:$0xf]
                %268 = vst [vmem:[%s254 + $0x18] sm:$0xf] %v267
                %v269 = vld [vmem:[%s253 + $0x54] sm:$0xf]
                %270 = vst [vmem:[%s254 + $0x1c] sm:$0xf] %v269
                %v271 = vld [vmem:[%s253 + $0x60] sm:$0xf]
                %272 = vst [vmem:[%s254 + $0x20] sm:$0xf] %v271
                %v273 = vld [vmem:[%s253 + $0x6c] sm:$0xf]
                %274 = vst [vmem:[%s254 + $0x24] sm:$0xf] %v273
                %v275 = vld [vmem:[%s253 + $0x78] sm:$0xf]
                %276 = vst [vmem:[%s254 + $0x28] sm:$0xf] %v275
                %v277 = vld [vmem:[%s253 + $0x84] sm:$0xf]
                %278 = vst [vmem:[%s254 + $0x2c] sm:$0xf] %v277
                %v279 = vld [vmem:[%s253 + $0x90] sm:$0xf]
                %280 = vst [vmem:[%s254 + $0x30] sm:$0xf] %v279
                %v281 = vld [vmem:[%s253 + $0x9c] sm:$0xf]
                %282 = vst [vmem:[%s254 + $0x34] sm:$0xf] %v281
                %v283 = vld [vmem:[%s253 + $0xa8] sm:$0xf]
                %284 = vst [vmem:[%s254 + $0x38] sm:$0xf] %v283
                %v285 = vld [vmem:[%s253 + $0xb4] sm:$0xf]
                %286 = vst [vmem:[%s254 + $0x3c] sm:$0xf] %v285
                %v287 = vld [vmem:[%s253 + $0xc0] sm:$0xf]
                %288 = vst [vmem:[%s254 + $0x40] sm:$0xf] %v287
                %v289 = vld [vmem:[%s253 + $0xcc] sm:$0xf]
                %290 = vst [vmem:[%s254 + $0x44] sm:$0xf] %v289
                %v291 = vld [vmem:[%s253 + $0xd8] sm:$0xf]
                %292 = vst [vmem:[%s254 + $0x48] sm:$0xf] %v291
                %v293 = vld [vmem:[%s253 + $0xe4] sm:$0xf]
                %294 = vst [vmem:[%s254 + $0x4c] sm:$0xf] %v293
                %v295 = vld [vmem:[%s253 + $0xf0] sm:$0xf]
                %296 = vst [vmem:[%s254 + $0x50] sm:$0xf] %v295
                %v297 = vld [vmem:[%s253 + $0xfc] sm:$0xf]
                %298 = vst [vmem:[%s254 + $0x54] sm:$0xf] %v297
                %v299 = vld [vmem:[%s253 + $0x108] sm:$0xf]
                %300 = vst [vmem:[%s254 + $0x58] sm:$0xf] %v299
                %v301 = vld [vmem:[%s253 + $0x114] sm:$0xf]
                %302 = vst [vmem:[%s254 + $0x5c] sm:$0xf] %v301
                %v303 = vld [vmem:[%s253 + $0x120] sm:$0xf]
                %304 = vst [vmem:[%s254 + $0x60] sm:$0xf] %v303
                %v305 = vld [vmem:[%s253 + $0x12c] sm:$0xf]
                %306 = vst [vmem:[%s254 + $0x64] sm:$0xf] %v305
                %v307 = vld [vmem:[%s253 + $0x138] sm:$0xf]
                %308 = vst [vmem:[%s254 + $0x68] sm:$0xf] %v307
                %v309 = vld [vmem:[%s253 + $0x144] sm:$0xf]
                %310 = vst [vmem:[%s254 + $0x6c] sm:$0xf] %v309
                %v311 = vld [vmem:[%s253 + $0x150] sm:$0xf]
                %312 = vst [vmem:[%s254 + $0x70] sm:$0xf] %v311
                %v313 = vld [vmem:[%s253 + $0x15c] sm:$0xf]
                %314 = vst [vmem:[%s254 + $0x74] sm:$0xf] %v313
                %v315 = vld [vmem:[%s253 + $0x168] sm:$0xf]
                %316 = vst [vmem:[%s254 + $0x78] sm:$0xf] %v315
                %v317 = vld [vmem:[%s253 + $0x174] sm:$0xf]
                %318 = vst [vmem:[%s254 + $0x7c] sm:$0xf] %v317
              $region49: #{share_svd_expert_forward.1} parent=43 // loop_footer
                %s252 = sadd.s32 1, %s248
              $region50: #{share_svd_expert_forward.1} parent=43 // loop_footer_branch
                %247 = sbr.rel target = $region46
              $region51: #{share_svd_expert_forward.1} parent=43 // loop_exit
                _
            $region44: #{share_svd_expert_forward.1} parent=35 // pred_fallthru
              _
          $region36: #{share_svd_expert_forward.1} parent=31 // pred_fallthru
            _
          %402 = vnop
        $region32: #{share_svd_expert_forward.1} parent=23 // pred_fallthru
          _
        // Predicated region
        $region70: #{share_svd_expert_forward.1} parent=23 // pred_check
          %p403 = pneg %p117
        $region71: #{share_svd_expert_forward.1} parent=23 // pred_check_branch
          %405 = sbr.rel (%p403) target = $region73
        $region72: #{share_svd_expert_forward.1} parent=23 // pred_region
          %s406 = sand.u32 %s107, 1
          %s407 = sand.u32 %s107, 1
          %s408 = smul.addr %s407, 128
          %s409 = scalar_lea.vmem [#allocation5], %s408
          %s410 = smul.addr %s20, 4
          %s411 = scalar_lea.vmem %s3, %s410
          // Predicated region
          $region74: #{share_svd_expert_forward.1} parent=72 // pred_check
            _
          $region75: #{share_svd_expert_forward.1} parent=72 // pred_check_branch
            %413 = sbr.rel (0) target = $region77
          $region76: #{share_svd_expert_forward.1} parent=72 // pred_region
            // Predicated region
            $region78: #{share_svd_expert_forward.1} parent=76 // pred_check
              _
            $region79: #{share_svd_expert_forward.1} parent=76 // pred_check_branch
              %415 = sbr.rel target = $region81
            $region80: #{share_svd_expert_forward.1} parent=76 // pred_region
              // Predicated region
              $region93: #{share_svd_expert_forward.1} parent=80 // pred_check
                _
              $region94: #{share_svd_expert_forward.1} parent=80 // pred_check_branch
                %492 = sbr.rel (0) target = $region96
              $region95: #{share_svd_expert_forward.1} parent=80 // pred_region
                loop: start=0, step=1, limit=1
                $region97: #{share_svd_expert_forward.1} parent=95 // loop_pre_header
                  _
                $region98: #{share_svd_expert_forward.1} parent=95 // loop_header
                  %s494 = sphi 0, %s498
                  %p495 = scmp.ge.s32.totalorder %s494, 1
                  %s499 = sphi %s411, %s411
                  %s500 = sphi %s409, %s409
                $region99: #{share_svd_expert_forward.1} parent=95 // loop_header_branch
                  %497 = sbr.rel (%p495) target = $region103
                $region100: #{share_svd_expert_forward.1} parent=95 // loop_body
                  _
                $region101: #{share_svd_expert_forward.1} parent=95 // loop_footer
                  %s498 = sadd.s32 1, %s494
                $region102: #{share_svd_expert_forward.1} parent=95 // loop_footer_branch
                  %493 = sbr.rel target = $region98
                $region103: #{share_svd_expert_forward.1} parent=95 // loop_exit
                  _
                loop: start=0, step=1, limit=1
                $region104: #{share_svd_expert_forward.1} parent=95 // loop_pre_header
                  _
                $region105: #{share_svd_expert_forward.1} parent=95 // loop_header
                  %s503 = sphi 0, %s507
                  %p504 = scmp.ge.s32.totalorder %s503, 1
                  %s508 = sphi %s411, %s411
                  %s509 = sphi %s409, %s409
                $region106: #{share_svd_expert_forward.1} parent=95 // loop_header_branch
                  %506 = sbr.rel (%p504) target = $region110
                $region107: #{share_svd_expert_forward.1} parent=95 // loop_body
                  %v510 = vld [vmem:[%s508] sm:$0xf]
                  %511 = vst [vmem:[%s509] sm:$0xf] %v510
                  %v512 = vld [vmem:[%s508 + $0xc] sm:$0xf]
                  %513 = vst [vmem:[%s509 + $0x4] sm:$0xf] %v512
                  %v514 = vld [vmem:[%s508 + $0x18] sm:$0xf]
                  %515 = vst [vmem:[%s509 + $0x8] sm:$0xf] %v514
                  %v516 = vld [vmem:[%s508 + $0x24] sm:$0xf]
                  %517 = vst [vmem:[%s509 + $0xc] sm:$0xf] %v516
                  %v518 = vld [vmem:[%s508 + $0x30] sm:$0xf]
                  %519 = vst [vmem:[%s509 + $0x10] sm:$0xf] %v518
                  %v520 = vld [vmem:[%s508 + $0x3c] sm:$0xf]
                  %521 = vst [vmem:[%s509 + $0x14] sm:$0xf] %v520
                  %v522 = vld [vmem:[%s508 + $0x48] sm:$0xf]
                  %523 = vst [vmem:[%s509 + $0x18] sm:$0xf] %v522
                  %v524 = vld [vmem:[%s508 + $0x54] sm:$0xf]
                  %525 = vst [vmem:[%s509 + $0x1c] sm:$0xf] %v524
                  %v526 = vld [vmem:[%s508 + $0x60] sm:$0xf]
                  %527 = vst [vmem:[%s509 + $0x20] sm:$0xf] %v526
                  %v528 = vld [vmem:[%s508 + $0x6c] sm:$0xf]
                  %529 = vst [vmem:[%s509 + $0x24] sm:$0xf] %v528
                  %v530 = vld [vmem:[%s508 + $0x78] sm:$0xf]
                  %531 = vst [vmem:[%s509 + $0x28] sm:$0xf] %v530
                  %v532 = vld [vmem:[%s508 + $0x84] sm:$0xf]
                  %533 = vst [vmem:[%s509 + $0x2c] sm:$0xf] %v532
                  %v534 = vld [vmem:[%s508 + $0x90] sm:$0xf]
                  %535 = vst [vmem:[%s509 + $0x30] sm:$0xf] %v534
                  %v536 = vld [vmem:[%s508 + $0x9c] sm:$0xf]
                  %537 = vst [vmem:[%s509 + $0x34] sm:$0xf] %v536
                  %v538 = vld [vmem:[%s508 + $0xa8] sm:$0xf]
                  %539 = vst [vmem:[%s509 + $0x38] sm:$0xf] %v538
                  %v540 = vld [vmem:[%s508 + $0xb4] sm:$0xf]
                  %541 = vst [vmem:[%s509 + $0x3c] sm:$0xf] %v540
                  %v542 = vld [vmem:[%s508 + $0xc0] sm:$0xf]
                  %543 = vst [vmem:[%s509 + $0x40] sm:$0xf] %v542
                  %v544 = vld [vmem:[%s508 + $0xcc] sm:$0xf]
                  %545 = vst [vmem:[%s509 + $0x44] sm:$0xf] %v544
                  %v546 = vld [vmem:[%s508 + $0xd8] sm:$0xf]
                  %547 = vst [vmem:[%s509 + $0x48] sm:$0xf] %v546
                  %v548 = vld [vmem:[%s508 + $0xe4] sm:$0xf]
                  %549 = vst [vmem:[%s509 + $0x4c] sm:$0xf] %v548
                  %v550 = vld [vmem:[%s508 + $0xf0] sm:$0xf]
                  %551 = vst [vmem:[%s509 + $0x50] sm:$0xf] %v550
                  %v552 = vld [vmem:[%s508 + $0xfc] sm:$0xf]
                  %553 = vst [vmem:[%s509 + $0x54] sm:$0xf] %v552
                  %v554 = vld [vmem:[%s508 + $0x108] sm:$0xf]
                  %555 = vst [vmem:[%s509 + $0x58] sm:$0xf] %v554
                  %v556 = vld [vmem:[%s508 + $0x114] sm:$0xf]
                  %557 = vst [vmem:[%s509 + $0x5c] sm:$0xf] %v556
                  %v558 = vld [vmem:[%s508 + $0x120] sm:$0xf]
                  %559 = vst [vmem:[%s509 + $0x60] sm:$0xf] %v558
                  %v560 = vld [vmem:[%s508 + $0x12c] sm:$0xf]
                  %561 = vst [vmem:[%s509 + $0x64] sm:$0xf] %v560
                  %v562 = vld [vmem:[%s508 + $0x138] sm:$0xf]
                  %563 = vst [vmem:[%s509 + $0x68] sm:$0xf] %v562
                  %v564 = vld [vmem:[%s508 + $0x144] sm:$0xf]
                  %565 = vst [vmem:[%s509 + $0x6c] sm:$0xf] %v564
                  %v566 = vld [vmem:[%s508 + $0x150] sm:$0xf]
                  %567 = vst [vmem:[%s509 + $0x70] sm:$0xf] %v566
                  %v568 = vld [vmem:[%s508 + $0x15c] sm:$0xf]
                  %569 = vst [vmem:[%s509 + $0x74] sm:$0xf] %v568
                  %v570 = vld [vmem:[%s508 + $0x168] sm:$0xf]
                  %571 = vst [vmem:[%s509 + $0x78] sm:$0xf] %v570
                  %v572 = vld [vmem:[%s508 + $0x174] sm:$0xf]
                  %573 = vst [vmem:[%s509 + $0x7c] sm:$0xf] %v572
                $region108: #{share_svd_expert_forward.1} parent=95 // loop_footer
                  %s507 = sadd.s32 1, %s503
                $region109: #{share_svd_expert_forward.1} parent=95 // loop_footer_branch
                  %502 = sbr.rel target = $region105
                $region110: #{share_svd_expert_forward.1} parent=95 // loop_exit
                  _
              $region96: #{share_svd_expert_forward.1} parent=80 // pred_fallthru
                _
            $region81: #{share_svd_expert_forward.1} parent=76 // pred_fallthru
              _
            // Predicated region
            $region82: #{share_svd_expert_forward.1} parent=76 // pred_check
              _
            $region83: #{share_svd_expert_forward.1} parent=76 // pred_check_branch
              %417 = sbr.rel (0) target = $region85
            $region84: #{share_svd_expert_forward.1} parent=76 // pred_region
              loop: start=0, step=1, limit=1
              $region86: #{share_svd_expert_forward.1} parent=84 // loop_pre_header
                _
              $region87: #{share_svd_expert_forward.1} parent=84 // loop_header
                %s420 = sphi 0, %s424
                %p421 = scmp.ge.s32.totalorder %s420, 1
                %s425 = sphi %s411, %s411
                %s426 = sphi %s409, %s409
              $region88: #{share_svd_expert_forward.1} parent=84 // loop_header_branch
                %423 = sbr.rel (%p421) target = $region92
              $region89: #{share_svd_expert_forward.1} parent=84 // loop_body
                %v427 = vld [vmem:[%s425] sm:$0xf]
                %428 = vst [vmem:[%s426] sm:$0xf] %v427
                %v429 = vld [vmem:[%s425 + $0xc] sm:$0xf]
                %430 = vst [vmem:[%s426 + $0x4] sm:$0xf] %v429
                %v431 = vld [vmem:[%s425 + $0x18] sm:$0xf]
                %432 = vst [vmem:[%s426 + $0x8] sm:$0xf] %v431
                %v433 = vld [vmem:[%s425 + $0x24] sm:$0xf]
                %434 = vst [vmem:[%s426 + $0xc] sm:$0xf] %v433
                %v435 = vld [vmem:[%s425 + $0x30] sm:$0xf]
                %436 = vst [vmem:[%s426 + $0x10] sm:$0xf] %v435
                %v437 = vld [vmem:[%s425 + $0x3c] sm:$0xf]
                %438 = vst [vmem:[%s426 + $0x14] sm:$0xf] %v437
                %v439 = vld [vmem:[%s425 + $0x48] sm:$0xf]
                %440 = vst [vmem:[%s426 + $0x18] sm:$0xf] %v439
                %v441 = vld [vmem:[%s425 + $0x54] sm:$0xf]
                %442 = vst [vmem:[%s426 + $0x1c] sm:$0xf] %v441
                %v443 = vld [vmem:[%s425 + $0x60] sm:$0xf]
                %444 = vst [vmem:[%s426 + $0x20] sm:$0xf] %v443
                %v445 = vld [vmem:[%s425 + $0x6c] sm:$0xf]
                %446 = vst [vmem:[%s426 + $0x24] sm:$0xf] %v445
                %v447 = vld [vmem:[%s425 + $0x78] sm:$0xf]
                %448 = vst [vmem:[%s426 + $0x28] sm:$0xf] %v447
                %v449 = vld [vmem:[%s425 + $0x84] sm:$0xf]
                %450 = vst [vmem:[%s426 + $0x2c] sm:$0xf] %v449
                %v451 = vld [vmem:[%s425 + $0x90] sm:$0xf]
                %452 = vst [vmem:[%s426 + $0x30] sm:$0xf] %v451
                %v453 = vld [vmem:[%s425 + $0x9c] sm:$0xf]
                %454 = vst [vmem:[%s426 + $0x34] sm:$0xf] %v453
                %v455 = vld [vmem:[%s425 + $0xa8] sm:$0xf]
                %456 = vst [vmem:[%s426 + $0x38] sm:$0xf] %v455
                %v457 = vld [vmem:[%s425 + $0xb4] sm:$0xf]
                %458 = vst [vmem:[%s426 + $0x3c] sm:$0xf] %v457
                %v459 = vld [vmem:[%s425 + $0xc0] sm:$0xf]
                %460 = vst [vmem:[%s426 + $0x40] sm:$0xf] %v459
                %v461 = vld [vmem:[%s425 + $0xcc] sm:$0xf]
                %462 = vst [vmem:[%s426 + $0x44] sm:$0xf] %v461
                %v463 = vld [vmem:[%s425 + $0xd8] sm:$0xf]
                %464 = vst [vmem:[%s426 + $0x48] sm:$0xf] %v463
                %v465 = vld [vmem:[%s425 + $0xe4] sm:$0xf]
                %466 = vst [vmem:[%s426 + $0x4c] sm:$0xf] %v465
                %v467 = vld [vmem:[%s425 + $0xf0] sm:$0xf]
                %468 = vst [vmem:[%s426 + $0x50] sm:$0xf] %v467
                %v469 = vld [vmem:[%s425 + $0xfc] sm:$0xf]
                %470 = vst [vmem:[%s426 + $0x54] sm:$0xf] %v469
                %v471 = vld [vmem:[%s425 + $0x108] sm:$0xf]
                %472 = vst [vmem:[%s426 + $0x58] sm:$0xf] %v471
                %v473 = vld [vmem:[%s425 + $0x114] sm:$0xf]
                %474 = vst [vmem:[%s426 + $0x5c] sm:$0xf] %v473
                %v475 = vld [vmem:[%s425 + $0x120] sm:$0xf]
                %476 = vst [vmem:[%s426 + $0x60] sm:$0xf] %v475
                %v477 = vld [vmem:[%s425 + $0x12c] sm:$0xf]
                %478 = vst [vmem:[%s426 + $0x64] sm:$0xf] %v477
                %v479 = vld [vmem:[%s425 + $0x138] sm:$0xf]
                %480 = vst [vmem:[%s426 + $0x68] sm:$0xf] %v479
                %v481 = vld [vmem:[%s425 + $0x144] sm:$0xf]
                %482 = vst [vmem:[%s426 + $0x6c] sm:$0xf] %v481
                %v483 = vld [vmem:[%s425 + $0x150] sm:$0xf]
                %484 = vst [vmem:[%s426 + $0x70] sm:$0xf] %v483
                %v485 = vld [vmem:[%s425 + $0x15c] sm:$0xf]
                %486 = vst [vmem:[%s426 + $0x74] sm:$0xf] %v485
                %v487 = vld [vmem:[%s425 + $0x168] sm:$0xf]
                %488 = vst [vmem:[%s426 + $0x78] sm:$0xf] %v487
                %v489 = vld [vmem:[%s425 + $0x174] sm:$0xf]
                %490 = vst [vmem:[%s426 + $0x7c] sm:$0xf] %v489
              $region90: #{share_svd_expert_forward.1} parent=84 // loop_footer
                %s424 = sadd.s32 1, %s420
              $region91: #{share_svd_expert_forward.1} parent=84 // loop_footer_branch
                %419 = sbr.rel target = $region87
              $region92: #{share_svd_expert_forward.1} parent=84 // loop_exit
                _
            $region85: #{share_svd_expert_forward.1} parent=76 // pred_fallthru
              _
          $region77: #{share_svd_expert_forward.1} parent=72 // pred_fallthru
            _
          %574 = vnop
        $region73: #{share_svd_expert_forward.1} parent=23 // pred_fallthru
          _
        // Predicated region
        $region111: #{share_svd_expert_forward.1} parent=23 // pred_check
          %p575 = pneg %p143
        $region112: #{share_svd_expert_forward.1} parent=23 // pred_check_branch
          %577 = sbr.rel (%p575) target = $region114
        $region113: #{share_svd_expert_forward.1} parent=23 // pred_region
          %s578 = smul.u32 16, %s20
          %p579 = scmp.lt.s32.totalorder %s578, 47
          %s580 = scalar_select %p579, %s578, 47
          %s581 = smul.addr %s580, 2
          %s582 = smul.addr %s581, 4
          %s583 = scalar_lea.vmem %s4, %s582
          %s584 = smul.u32 16, %s20
        $region114: #{share_svd_expert_forward.1} parent=23 // pred_fallthru
          _
      $region24: #{share_svd_expert_forward.1} parent=5 // pred_fallthru
        _
      %p585 = scmp.le.s32.totalorder 1, %s12
      %p586 = scmp.lt.s32.totalorder %s12, 7
      %p587 = pnand %p585, %p586
      %p588 = pneg %p587
      // Predicated region
      $region115: #{share_svd_expert_forward.1} parent=5 // pred_check
        _
      $region116: #{share_svd_expert_forward.1} parent=5 // pred_check_branch
        %590 = sbr.rel (%p587) target = $region118
      $region117: #{share_svd_expert_forward.1} parent=5 // pred_region
        %s591 = ssub.s32 %s12, 1
        %s592 = sand.u32 %s84, 1
        %s593 = sand.u32 %s84, 1
        %s594 = smul.addr %s593, 128
        %s595 = scalar_lea.vmem [#allocation4], %s594
        // Predicated region
        $region119: #{share_svd_expert_forward.1} parent=117 // pred_check
          %p596 = pneg %p97
        $region120: #{share_svd_expert_forward.1} parent=117 // pred_check_branch
          %598 = sbr.rel (%p596) target = $region122
        $region121: #{share_svd_expert_forward.1} parent=117 // pred_region
          _
        $region122: #{share_svd_expert_forward.1} parent=117 // pred_fallthru
          _
        %s599 = sand.u32 %s110, 1
        %s600 = sand.u32 %s110, 1
        %s601 = smul.addr %s600, 128
        %s602 = scalar_lea.vmem [#allocation5], %s601
        // Predicated region
        $region123: #{share_svd_expert_forward.1} parent=117 // pred_check
          %p603 = pneg %p123
        $region124: #{share_svd_expert_forward.1} parent=117 // pred_check_branch
          %605 = sbr.rel (%p603) target = $region126
        $region125: #{share_svd_expert_forward.1} parent=117 // pred_region
          _
        $region126: #{share_svd_expert_forward.1} parent=117 // pred_fallthru
          _
        %s606 = smul.u32 16, %s21
        %p607 = scmp.lt.s32.totalorder %s606, 31
        %s608 = scalar_select %p607, %s606, 31
        %s609 = smul.addr %s608, 2
        %s610 = smul.addr %s609, 4
        %s611 = scalar_lea.vmem %s0, %s610
        %p612 = pneg %p50
        %p613 = pneg %p47
        %p614 = pneg %p71
        %p615 = pneg %p68
        %s616 = sand.u32 %s84, 1
        %s617 = sand.u32 %s84, 1
        %s618 = smul.addr %s617, 128
        %s619 = scalar_lea.vmem [#allocation4], %s618
        %p620 = pneg %p97
        %p621 = pneg %p94
        %s622 = sand.u32 %s110, 1
        %s623 = sand.u32 %s110, 1
        %s624 = smul.addr %s623, 128
        %s625 = scalar_lea.vmem [#allocation5], %s624
        %p626 = pneg %p123
        %p627 = pneg %p120
        %s628 = smul.u32 16, %s22
        %p629 = scmp.lt.s32.totalorder %s628, 47
        %s630 = scalar_select %p629, %s628, 47
        %s631 = smul.addr %s630, 2
        %s632 = smul.addr %s631, 4
        %s633 = scalar_lea.vmem %s4, %s632
        %p634 = pneg %p149
        %p635 = pneg %p146
        %p636 = pneg %p170
        %p637 = pneg %p167
        %p638 = pneg %p196
        %p639 = pneg %p193
        %s640 = smul.u32 16, %s21
        %p641 = scmp.lt.s32.totalorder %s640, 31
        %s642 = scalar_select %p641, %s640, 31
        %s643 = smul.addr %s642, 2
        %s644 = smul.addr %s643, 4
        %s645 = scalar_lea.vmem %s6, %s644
        %s646 = smul.u32 16, %s21
        %p647 = scmp.lt.s32.totalorder %s646, 31
        %s648 = scalar_select %p647, %s646, 31
        %s649 = smul.addr %s648, 2
        %s650 = smul.addr %s649, 4
        %s651 = scalar_lea.vmem %s0, %s650
        %s652 = smul.u32 16, %s21
        %s653 = smul.u32 16, %s22
        %p654 = scmp.lt.s32.totalorder %s653, 47
        %s655 = scalar_select %p654, %s653, 47
        %s656 = smul.addr %s655, 2
        %s657 = smul.addr %s656, 4
        %s658 = scalar_lea.vmem %s4, %s657
        %s659 = smul.u32 16, %s22
        %s660 = smul.u32 16, %s21
        %p661 = scmp.lt.s32.totalorder %s660, 31
        %s662 = scalar_select %p661, %s660, 31
        %s663 = smul.addr %s662, 2
        %s664 = smul.addr %s663, 4
        %s665 = scalar_lea.vmem %s6, %s664
        %s666 = smul.u32 16, %s21
        %p668 = scmp.eq.s32.totalorder %s22, 0
        // Predicated region
        $region127: #{share_svd_expert_forward.1} parent=117 // pred_check
          %p669 = pneg %p668
        $region128: #{share_svd_expert_forward.1} parent=117 // pred_check_branch
          %671 = sbr.rel (%p669) target = $region130
        $region129: #{share_svd_expert_forward.1} parent=117 // pred_region
          %v672 = vld [vmem:[%s651] sm:$0xff]
          %v673 = vld [vmem:[%s651 + $0x8] sm:$0xff]
          %v674 = vld [vmem:[%s651 + $0x10] sm:$0xff]
          %v675 = vld [vmem:[%s651 + $0x18] sm:$0xff]
          %v676 = vld [vmem:[%s651 + $0x20] sm:$0xff]
          %v677 = vld [vmem:[%s651 + $0x28] sm:$0xff]
          %v678 = vld [vmem:[%s651 + $0x30] sm:$0xff]
          %v679 = vld [vmem:[%s651 + $0x38] sm:$0xff]
          %v680 = vld [vmem:[%s651 + $0x40] sm:$0xff]
          %v681 = vld [vmem:[%s651 + $0x48] sm:$0xff]
          %v682 = vld [vmem:[%s651 + $0x50] sm:$0xff]
          %v683 = vld [vmem:[%s651 + $0x58] sm:$0xff]
          %v684 = vld [vmem:[%s651 + $0x60] sm:$0xff]
          %v685 = vld [vmem:[%s651 + $0x68] sm:$0xff]
          %v686 = vld [vmem:[%s651 + $0x70] sm:$0xff]
          %v687 = vld [vmem:[%s651 + $0x78] sm:$0xff]
          %v688 = vld [vmem:[%s1] sm:$0xff]
          %v689 = vld [vmem:[%s1 + $0x8] sm:$0xff]
          %v690 = vld [vmem:[%s1 + $0x10] sm:$0xff]
          %v691 = vld [vmem:[%s1 + $0x18] sm:$0xff]
          %v692 = vld [vmem:[%s1 + $0x20] sm:$0xff]
          %v693 = vld [vmem:[%s1 + $0x28] sm:$0xff]
          %v694 = vld [vmem:[%s1 + $0x30] sm:$0xff]
          %v695 = vld [vmem:[%s1 + $0x38] sm:$0xff]
          %v696 = vld [vmem:[%s1 + $0x40] sm:$0xff]
          %v697 = vld [vmem:[%s1 + $0x48] sm:$0xff]
          %v698 = vld [vmem:[%s1 + $0x50] sm:$0xff]
          %v699 = vld [vmem:[%s1 + $0x58] sm:$0xff]
          %v700 = vld [vmem:[%s1 + $0x60] sm:$0xff]
          %v701 = vld [vmem:[%s1 + $0x68] sm:$0xff]
          %v702 = vld [vmem:[%s1 + $0x70] sm:$0xff]
          %v703 = vld [vmem:[%s1 + $0x78] sm:$0xff]
          %v704 = vld [vmem:[%s1 + $0x80] sm:$0xff]
          %v705 = vld [vmem:[%s1 + $0x88] sm:$0xff]
          %v706 = vld [vmem:[%s1 + $0x90] sm:$0xff]
          %v707 = vld [vmem:[%s1 + $0x98] sm:$0xff]
          %v708 = vld [vmem:[%s1 + $0xa0] sm:$0xff]
          %v709 = vld [vmem:[%s1 + $0xa8] sm:$0xff]
          %v710 = vld [vmem:[%s1 + $0xb0] sm:$0xff]
          %v711 = vld [vmem:[%s1 + $0xb8] sm:$0xff]
          %v712 = vld [vmem:[%s1 + $0xc0] sm:$0xff]
          %v713 = vld [vmem:[%s1 + $0xc8] sm:$0xff]
          %v714 = vld [vmem:[%s1 + $0xd0] sm:$0xff]
          %v715 = vld [vmem:[%s1 + $0xd8] sm:$0xff]
          %v716 = vld [vmem:[%s1 + $0xe0] sm:$0xff]
          %v717 = vld [vmem:[%s1 + $0xe8] sm:$0xff]
          %v718 = vld [vmem:[%s1 + $0xf0] sm:$0xff]
          %v719 = vld [vmem:[%s1 + $0xf8] sm:$0xff]
          %v720 = vld [vmem:[%s1 + $0x100] sm:$0xff]
          %v721 = vld [vmem:[%s1 + $0x108] sm:$0xff]
          %v722 = vld [vmem:[%s1 + $0x110] sm:$0xff]
          %v723 = vld [vmem:[%s1 + $0x118] sm:$0xff]
          %v724 = vld [vmem:[%s1 + $0x120] sm:$0xff]
          %v725 = vld [vmem:[%s1 + $0x128] sm:$0xff]
          %v726 = vld [vmem:[%s1 + $0x130] sm:$0xff]
          %v727 = vld [vmem:[%s1 + $0x138] sm:$0xff]
          %v728 = vld [vmem:[%s1 + $0x140] sm:$0xff]
          %v729 = vld [vmem:[%s1 + $0x148] sm:$0xff]
          %v730 = vld [vmem:[%s1 + $0x150] sm:$0xff]
          %v731 = vld [vmem:[%s1 + $0x158] sm:$0xff]
          %v732 = vld [vmem:[%s1 + $0x160] sm:$0xff]
          %v733 = vld [vmem:[%s1 + $0x168] sm:$0xff]
          %v734 = vld [vmem:[%s1 + $0x170] sm:$0xff]
          %v735 = vld [vmem:[%s1 + $0x178] sm:$0xff]
          %v752 = vunpack.c.l.b16 %v672
          %v753 = vunpack.c.h.b16 %v672
          %v754 = vunpack.c.l.b16 %v673
          %v755 = vunpack.c.h.b16 %v673
          %v756 = vunpack.c.l.b16 %v674
          %v757 = vunpack.c.h.b16 %v674
          %v758 = vunpack.c.l.b16 %v675
          %v759 = vunpack.c.h.b16 %v675
          %v760 = vunpack.c.l.b16 %v676
          %v761 = vunpack.c.h.b16 %v676
          %v762 = vunpack.c.l.b16 %v677
          %v763 = vunpack.c.h.b16 %v677
          %v764 = vunpack.c.l.b16 %v678
          %v765 = vunpack.c.h.b16 %v678
          %v766 = vunpack.c.l.b16 %v679
          %v767 = vunpack.c.h.b16 %v679
          %v768 = vunpack.c.l.b16 %v680
          %v769 = vunpack.c.h.b16 %v680
          %v770 = vunpack.c.l.b16 %v681
          %v771 = vunpack.c.h.b16 %v681
          %v772 = vunpack.c.l.b16 %v682
          %v773 = vunpack.c.h.b16 %v682
          %v774 = vunpack.c.l.b16 %v683
          %v775 = vunpack.c.h.b16 %v683
          %v776 = vunpack.c.l.b16 %v684
          %v777 = vunpack.c.h.b16 %v684
          %v778 = vunpack.c.l.b16 %v685
          %v779 = vunpack.c.h.b16 %v685
          %v780 = vunpack.c.l.b16 %v686
          %v781 = vunpack.c.h.b16 %v686
          %v782 = vunpack.c.l.b16 %v687
          %v783 = vunpack.c.h.b16 %v687
          %v784 = vpack.c.b16 %v754, %v752
          %v785 = vpack.c.b16 %v755, %v753
          %v786 = vpack.c.b16 %v758, %v756
          %v787 = vpack.c.b16 %v759, %v757
          %v788 = vpack.c.b16 %v762, %v760
          %v789 = vpack.c.b16 %v763, %v761
          %v790 = vpack.c.b16 %v766, %v764
          %v791 = vpack.c.b16 %v767, %v765
          %v792 = vpack.c.b16 %v770, %v768
          %v793 = vpack.c.b16 %v771, %v769
          %v794 = vpack.c.b16 %v774, %v772
          %v795 = vpack.c.b16 %v775, %v773
          %v796 = vpack.c.b16 %v778, %v776
          %v797 = vpack.c.b16 %v779, %v777
          %v798 = vpack.c.b16 %v782, %v780
          %v799 = vpack.c.b16 %v783, %v781
          %v856 = vunpack.c.l.b16 %v688
          %v857 = vunpack.c.h.b16 %v688
          %v858 = vunpack.c.l.b16 %v689
          %v859 = vunpack.c.h.b16 %v689
          %v860 = vunpack.c.l.b16 %v690
          %v861 = vunpack.c.h.b16 %v690
          %v862 = vunpack.c.l.b16 %v691
          %v863 = vunpack.c.h.b16 %v691
          %v864 = vunpack.c.l.b16 %v692
          %v865 = vunpack.c.h.b16 %v692
          %v866 = vunpack.c.l.b16 %v693
          %v867 = vunpack.c.h.b16 %v693
          %v868 = vunpack.c.l.b16 %v694
          %v869 = vunpack.c.h.b16 %v694
          %v870 = vunpack.c.l.b16 %v695
          %v871 = vunpack.c.h.b16 %v695
          %v872 = vunpack.c.l.b16 %v696
          %v873 = vunpack.c.h.b16 %v696
          %v874 = vunpack.c.l.b16 %v697
          %v875 = vunpack.c.h.b16 %v697
          %v876 = vunpack.c.l.b16 %v698
          %v877 = vunpack.c.h.b16 %v698
          %v878 = vunpack.c.l.b16 %v699
          %v879 = vunpack.c.h.b16 %v699
          %v880 = vunpack.c.l.b16 %v700
          %v881 = vunpack.c.h.b16 %v700
          %v882 = vunpack.c.l.b16 %v701
          %v883 = vunpack.c.h.b16 %v701
          %v884 = vunpack.c.l.b16 %v702
          %v885 = vunpack.c.h.b16 %v702
          %v886 = vunpack.c.l.b16 %v703
          %v887 = vunpack.c.h.b16 %v703
          %v888 = vunpack.c.l.b16 %v704
          %v889 = vunpack.c.h.b16 %v704
          %v890 = vunpack.c.l.b16 %v705
          %v891 = vunpack.c.h.b16 %v705
          %v892 = vunpack.c.l.b16 %v706
          %v893 = vunpack.c.h.b16 %v706
          %v894 = vunpack.c.l.b16 %v707
          %v895 = vunpack.c.h.b16 %v707
          %v896 = vunpack.c.l.b16 %v708
          %v897 = vunpack.c.h.b16 %v708
          %v898 = vunpack.c.l.b16 %v709
          %v899 = vunpack.c.h.b16 %v709
          %v900 = vunpack.c.l.b16 %v710
          %v901 = vunpack.c.h.b16 %v710
          %v902 = vunpack.c.l.b16 %v711
          %v903 = vunpack.c.h.b16 %v711
          %v904 = vunpack.c.l.b16 %v712
          %v905 = vunpack.c.h.b16 %v712
          %v906 = vunpack.c.l.b16 %v713
          %v907 = vunpack.c.h.b16 %v713
          %v908 = vunpack.c.l.b16 %v714
          %v909 = vunpack.c.h.b16 %v714
          %v910 = vunpack.c.l.b16 %v715
          %v911 = vunpack.c.h.b16 %v715
          %v912 = vunpack.c.l.b16 %v716
          %v913 = vunpack.c.h.b16 %v716
          %v914 = vunpack.c.l.b16 %v717
          %v915 = vunpack.c.h.b16 %v717
          %v916 = vunpack.c.l.b16 %v718
          %v917 = vunpack.c.h.b16 %v718
          %v918 = vunpack.c.l.b16 %v719
          %v919 = vunpack.c.h.b16 %v719
          %v920 = vunpack.c.l.b16 %v720
          %v921 = vunpack.c.h.b16 %v720
          %v922 = vunpack.c.l.b16 %v721
          %v923 = vunpack.c.h.b16 %v721
          %v924 = vunpack.c.l.b16 %v722
          %v925 = vunpack.c.h.b16 %v722
          %v926 = vunpack.c.l.b16 %v723
          %v927 = vunpack.c.h.b16 %v723
          %v928 = vunpack.c.l.b16 %v724
          %v929 = vunpack.c.h.b16 %v724
          %v930 = vunpack.c.l.b16 %v725
          %v931 = vunpack.c.h.b16 %v725
          %v932 = vunpack.c.l.b16 %v726
          %v933 = vunpack.c.h.b16 %v726
          %v934 = vunpack.c.l.b16 %v727
          %v935 = vunpack.c.h.b16 %v727
          %v936 = vunpack.c.l.b16 %v728
          %v937 = vunpack.c.h.b16 %v728
          %v938 = vunpack.c.l.b16 %v729
          %v939 = vunpack.c.h.b16 %v729
          %v940 = vunpack.c.l.b16 %v730
          %v941 = vunpack.c.h.b16 %v730
          %v942 = vunpack.c.l.b16 %v731
          %v943 = vunpack.c.h.b16 %v731
          %v944 = vunpack.c.l.b16 %v732
          %v945 = vunpack.c.h.b16 %v732
          %v946 = vunpack.c.l.b16 %v733
          %v947 = vunpack.c.h.b16 %v733
          %v948 = vunpack.c.l.b16 %v734
          %v949 = vunpack.c.h.b16 %v734
          %v950 = vunpack.c.l.b16 %v735
          %v951 = vunpack.c.h.b16 %v735
          %v952 = vpack.c.b16 %v860, %v856
          %v953 = vpack.c.b16 %v861, %v857
          %v954 = vpack.c.b16 %v862, %v858
          %v955 = vpack.c.b16 %v863, %v859
          %v956 = vpack.c.b16 %v868, %v864
          %v957 = vpack.c.b16 %v869, %v865
          %v958 = vpack.c.b16 %v870, %v866
          %v959 = vpack.c.b16 %v871, %v867
          %v960 = vpack.c.b16 %v876, %v872
          %v961 = vpack.c.b16 %v877, %v873
          %v962 = vpack.c.b16 %v878, %v874
          %v963 = vpack.c.b16 %v879, %v875
          %v964 = vpack.c.b16 %v884, %v880
          %v965 = vpack.c.b16 %v885, %v881
          %v966 = vpack.c.b16 %v886, %v882
          %v967 = vpack.c.b16 %v887, %v883
          %v968 = vpack.c.b16 %v892, %v888
          %v969 = vpack.c.b16 %v893, %v889
          %v970 = vpack.c.b16 %v894, %v890
          %v971 = vpack.c.b16 %v895, %v891
          %v972 = vpack.c.b16 %v900, %v896
          %v973 = vpack.c.b16 %v901, %v897
          %v974 = vpack.c.b16 %v902, %v898
          %v975 = vpack.c.b16 %v903, %v899
          %v976 = vpack.c.b16 %v908, %v904
          %v977 = vpack.c.b16 %v909, %v905
          %v978 = vpack.c.b16 %v910, %v906
          %v979 = vpack.c.b16 %v911, %v907
          %v980 = vpack.c.b16 %v916, %v912
          %v981 = vpack.c.b16 %v917, %v913
          %v982 = vpack.c.b16 %v918, %v914
          %v983 = vpack.c.b16 %v919, %v915
          %v984 = vpack.c.b16 %v924, %v920
          %v985 = vpack.c.b16 %v925, %v921
          %v986 = vpack.c.b16 %v926, %v922
          %v987 = vpack.c.b16 %v927, %v923
          %v988 = vpack.c.b16 %v932, %v928
          %v989 = vpack.c.b16 %v933, %v929
          %v990 = vpack.c.b16 %v934, %v930
          %v991 = vpack.c.b16 %v935, %v931
          %v992 = vpack.c.b16 %v940, %v936
          %v993 = vpack.c.b16 %v941, %v937
          %v994 = vpack.c.b16 %v942, %v938
          %v995 = vpack.c.b16 %v943, %v939
          %v996 = vpack.c.b16 %v948, %v944
          %v997 = vpack.c.b16 %v949, %v945
          %v998 = vpack.c.b16 %v950, %v946
          %v999 = vpack.c.b16 %v951, %v947
          %vm1048 = vcmask 523264
          %v1050 = vsel %vm1048, %v785, 0
          %v1053 = vsel %vm1048, %v787, 0
          %v1056 = vsel %vm1048, %v789, 0
          %v1059 = vsel %vm1048, %v791, 0
          %v1062 = vsel %vm1048, %v793, 0
          %v1065 = vsel %vm1048, %v795, 0
          %v1068 = vsel %vm1048, %v797, 0
          %v1071 = vsel %vm1048, %v799, 0
          %1073 = vmatprep.subr.bf16.mxu0 %v953
          %1074 = vmatpush1.bf16.msra.mxu0 %v952
          %1075 = vmatprep.subr.bf16.mxu0 %v957
          %1076 = vmatpush1.bf16.msra.mxu0 %v956
          %1077 = vmatprep.subr.bf16.mxu0 %v961
          %1078 = vmatpush1.bf16.msra.mxu0 %v960
          %1079 = vmatprep.subr.bf16.mxu0 %v965
          %1080 = vmatpush1.bf16.msra.mxu0 %v964
          %1081 = vmatprep.subr.bf16.mxu0 %v969
          %1082 = vmatpush1.bf16.msra.mxu0 %v968
          %1083 = vmatprep.subr.bf16.mxu0 %v973
          %1084 = vmatpush1.bf16.msra.mxu0 %v972
          %1085 = vmatprep.subr.bf16.mxu0 %v977
          %1086 = vmatpush1.bf16.msra.mxu0 %v976
          %1087 = vmatprep.subr.bf16.mxu0 %v981
          %1088 = vmatpush1.bf16.msra.mxu0 %v980
          %1089 = vmatprep.subr.bf16.mxu0 %v985
          %1090 = vmatpush1.bf16.msra.mxu0 %v984
          %1091 = vmatprep.subr.bf16.mxu0 %v989
          %1092 = vmatpush1.bf16.msra.mxu0 %v988
          %1093 = vmatprep.subr.bf16.mxu0 %v993
          %1094 = vmatpush1.bf16.msra.mxu0 %v992
          %1095 = vmatprep.subr.bf16.mxu0 %v997
          %1096 = vmatpush1.bf16.msra.mxu0 %v996
          %1097 = vmatprep.subr.bf16.mxu0 0
          %1098 = vmatpush1.bf16.msra.mxu0 0
          %1099 = vmatprep.subr.bf16.mxu0 0
          %1100 = vmatpush1.bf16.msra.mxu0 0
          %1101 = vmatprep.subr.bf16.mxu0 0
          %1102 = vmatpush1.bf16.msra.mxu0 0
          %1103 = vmatprep.subr.bf16.mxu0 0
          %1104 = vmatpush1.bf16.msra.mxu0 0
          %1105 = vmatprep.mubr.bf16.mxu0 %v1050
          %1106 = vmatmul.mubr.bf16.gmra.mrb[0].mxu0 %v784
          %v1107 = vpop.f32.mrb[0].mxu0
          %v1108 = vadd.f32 0.0, %v1107
          %v1109 = vpop.f32.mrb[0].mxu0
          %v1110 = vadd.f32 0.0, %v1109
          %v1111 = vpop.f32.mrb[0].mxu0
          %v1112 = vadd.f32 0.0, %v1111
          %v1113 = vpop.f32.mrb[0].mxu0
          %v1114 = vadd.f32 0.0, %v1113
          %1115 = vmatprep.mubr.bf16.mxu0 %v1053
          %1116 = vmatmul.mubr.bf16.gmra.mrb[0].mxu0 %v786
          %v1117 = vpop.f32.mrb[0].mxu0
          %v1118 = vadd.f32 0.0, %v1117
          %v1119 = vpop.f32.mrb[0].mxu0
          %v1120 = vadd.f32 0.0, %v1119
          %v1121 = vpop.f32.mrb[0].mxu0
          %v1122 = vadd.f32 0.0, %v1121
          %v1123 = vpop.f32.mrb[0].mxu0
          %v1124 = vadd.f32 0.0, %v1123
          %1125 = vmatprep.mubr.bf16.mxu0 %v1056
          %1126 = vmatmul.mubr.bf16.gmra.mrb[0].mxu0 %v788
          %v1127 = vpop.f32.mrb[0].mxu0
          %v1128 = vadd.f32 0.0, %v1127
          %v1129 = vpop.f32.mrb[0].mxu0
          %v1130 = vadd.f32 0.0, %v1129
          %v1131 = vpop.f32.mrb[0].mxu0
          %v1132 = vadd.f32 0.0, %v1131
          %v1133 = vpop.f32.mrb[0].mxu0
          %v1134 = vadd.f32 0.0, %v1133
          %1135 = vmatprep.mubr.bf16.mxu0 %v1059
          %1136 = vmatmul.mubr.bf16.gmra.mrb[0].mxu0 %v790
          %v1137 = vpop.f32.mrb[0].mxu0
          %v1138 = vadd.f32 0.0, %v1137
          %v1139 = vpop.f32.mrb[0].mxu0
          %v1140 = vadd.f32 0.0, %v1139
          %v1141 = vpop.f32.mrb[0].mxu0
          %v1142 = vadd.f32 0.0, %v1141
          %v1143 = vpop.f32.mrb[0].mxu0
          %v1144 = vadd.f32 0.0, %v1143
          %1145 = vmatprep.mubr.bf16.mxu0 %v1062
          %1146 = vmatmul.mubr.bf16.gmra.mrb[0].mxu0 %v792
          %v1147 = vpop.f32.mrb[0].mxu0
          %v1148 = vadd.f32 0.0, %v1147
          %v1149 = vpop.f32.mrb[0].mxu0
          %v1150 = vadd.f32 0.0, %v1149
          %v1151 = vpop.f32.mrb[0].mxu0
          %v1152 = vadd.f32 0.0, %v1151
          %v1153 = vpop.f32.mrb[0].mxu0
          %v1154 = vadd.f32 0.0, %v1153
          %1155 = vmatprep.mubr.bf16.mxu0 %v1065
          %1156 = vmatmul.mubr.bf16.gmra.mrb[0].mxu0 %v794
          %v1157 = vpop.f32.mrb[0].mxu0
          %v1158 = vadd.f32 0.0, %v1157
          %v1159 = vpop.f32.mrb[0].mxu0
          %v1160 = vadd.f32 0.0, %v1159
          %v1161 = vpop.f32.mrb[0].mxu0
          %v1162 = vadd.f32 0.0, %v1161
          %v1163 = vpop.f32.mrb[0].mxu0
          %v1164 = vadd.f32 0.0, %v1163
          %1165 = vmatprep.mubr.bf16.mxu0 %v1068
          %1166 = vmatmul.mubr.bf16.gmra.mrb[0].mxu0 %v796
          %v1167 = vpop.f32.mrb[0].mxu0
          %v1168 = vadd.f32 0.0, %v1167
          %v1169 = vpop.f32.mrb[0].mxu0
          %v1170 = vadd.f32 0.0, %v1169
          %v1171 = vpop.f32.mrb[0].mxu0
          %v1172 = vadd.f32 0.0, %v1171
          %v1173 = vpop.f32.mrb[0].mxu0
          %v1174 = vadd.f32 0.0, %v1173
          %1175 = vmatprep.mubr.bf16.mxu0 %v1071
          %1176 = vmatmul.mubr.bf16.gmra.mrb[0].mxu0 %v798
          %v1177 = vpop.f32.mrb[0].mxu0
          %v1178 = vadd.f32 0.0, %v1177
          %v1179 = vpop.f32.mrb[0].mxu0
          %v1180 = vadd.f32 0.0, %v1179
          %v1181 = vpop.f32.mrb[0].mxu0
          %v1182 = vadd.f32 0.0, %v1181
          %v1183 = vpop.f32.mrb[0].mxu0
          %v1184 = vadd.f32 0.0, %v1183
          %1185 = vdwg.mxu0
          %1186 = vmatprep.subr.bf16.mxu0 %v955
          %1187 = vmatpush1.bf16.msra.mxu0 %v954
          %1188 = vmatprep.subr.bf16.mxu0 %v959
          %1189 = vmatpush1.bf16.msra.mxu0 %v958
          %1190 = vmatprep.subr.bf16.mxu0 %v963
          %1191 = vmatpush1.bf16.msra.mxu0 %v962
          %1192 = vmatprep.subr.bf16.mxu0 %v967
          %1193 = vmatpush1.bf16.msra.mxu0 %v966
          %1194 = vmatprep.subr.bf16.mxu0 %v971
          %1195 = vmatpush1.bf16.msra.mxu0 %v970
          %1196 = vmatprep.subr.bf16.mxu0 %v975
          %1197 = vmatpush1.bf16.msra.mxu0 %v974
          %1198 = vmatprep.subr.bf16.mxu0 %v979
          %1199 = vmatpush1.bf16.msra.mxu0 %v978
          %1200 = vmatprep.subr.bf16.mxu0 %v983
          %1201 = vmatpush1.bf16.msra.mxu0 %v982
          %1202 = vmatprep.subr.bf16.mxu0 %v987
          %1203 = vmatpush1.bf16.msra.mxu0 %v986
          %1204 = vmatprep.subr.bf16.mxu0 %v991
          %1205 = vmatpush1.bf16.msra.mxu0 %v990
          %1206 = vmatprep.subr.bf16.mxu0 %v995
          %1207 = vmatpush1.bf16.msra.mxu0 %v994
          %1208 = vmatprep.subr.bf16.mxu0 %v999
          %1209 = vmatpush1.bf16.msra.mxu0 %v998
          %1210 = vmatprep.subr.bf16.mxu0 0
          %1211 = vmatpush1.bf16.msra.mxu0 0
          %1212 = vmatprep.subr.bf16.mxu0 0
          %1213 = vmatpush1.bf16.msra.mxu0 0
          %1214 = vmatprep.subr.bf16.mxu0 0
          %1215 = vmatpush1.bf16.msra.mxu0 0
          %1216 = vmatprep.subr.bf16.mxu0 0
          %1217 = vmatpush1.bf16.msra.mxu0 0
          %1218 = vmatprep.mubr.bf16.mxu0 %v1050
          %1219 = vmatmul.mubr.bf16.gmra.mrb[0].mxu0 %v784
          %v1220 = vpop.f32.mrb[0].mxu0
          %v1221 = vadd.f32 0.0, %v1220
          %v1222 = vpop.f32.mrb[0].mxu0
          %v1223 = vadd.f32 0.0, %v1222
          %v1224 = vpop.f32.mrb[0].mxu0
          %v1225 = vadd.f32 0.0, %v1224
          %v1226 = vpop.f32.mrb[0].mxu0
          %v1227 = vadd.f32 0.0, %v1226
          %1228 = vmatprep.mubr.bf16.mxu0 %v1053
          %1229 = vmatmul.mubr.bf16.gmra.mrb[0].mxu0 %v786
          %v1230 = vpop.f32.mrb[0].mxu0
          %v1231 = vadd.f32 0.0, %v1230
          %v1232 = vpop.f32.mrb[0].mxu0
          %v1233 = vadd.f32 0.0, %v1232
          %v1234 = vpop.f32.mrb[0].mxu0
          %v1235 = vadd.f32 0.0, %v1234
          %v1236 = vpop.f32.mrb[0].mxu0
          %v1237 = vadd.f32 0.0, %v1236
          %1238 = vmatprep.mubr.bf16.mxu0 %v1056
          %1239 = vmatmul.mubr.bf16.gmra.mrb[0].mxu0 %v788
          %v1240 = vpop.f32.mrb[0].mxu0
          %v1241 = vadd.f32 0.0, %v1240
          %v1242 = vpop.f32.mrb[0].mxu0
          %v1243 = vadd.f32 0.0, %v1242
          %v1244 = vpop.f32.mrb[0].mxu0
          %v1245 = vadd.f32 0.0, %v1244
          %v1246 = vpop.f32.mrb[0].mxu0
          %v1247 = vadd.f32 0.0, %v1246
          %1248 = vmatprep.mubr.bf16.mxu0 %v1059
          %1249 = vmatmul.mubr.bf16.gmra.mrb[0].mxu0 %v790
          %v1250 = vpop.f32.mrb[0].mxu0
          %v1251 = vadd.f32 0.0, %v1250
          %v1252 = vpop.f32.mrb[0].mxu0
          %v1253 = vadd.f32 0.0, %v1252
          %v1254 = vpop.f32.mrb[0].mxu0
          %v1255 = vadd.f32 0.0, %v1254
          %v1256 = vpop.f32.mrb[0].mxu0
          %v1257 = vadd.f32 0.0, %v1256
          %1258 = vmatprep.mubr.bf16.mxu0 %v1062
          %1259 = vmatmul.mubr.bf16.gmra.mrb[0].mxu0 %v792
          %v1260 = vpop.f32.mrb[0].mxu0
          %v1261 = vadd.f32 0.0, %v1260
          %v1262 = vpop.f32.mrb[0].mxu0
          %v1263 = vadd.f32 0.0, %v1262
          %v1264 = vpop.f32.mrb[0].mxu0
          %v1265 = vadd.f32 0.0, %v1264
          %v1266 = vpop.f32.mrb[0].mxu0
          %v1267 = vadd.f32 0.0, %v1266
          %1268 = vmatprep.mubr.bf16.mxu0 %v1065
          %1269 = vmatmul.mubr.bf16.gmra.mrb[0].mxu0 %v794
          %v1270 = vpop.f32.mrb[0].mxu0
          %v1271 = vadd.f32 0.0, %v1270
          %v1272 = vpop.f32.mrb[0].mxu0
          %v1273 = vadd.f32 0.0, %v1272
          %v1274 = vpop.f32.mrb[0].mxu0
          %v1275 = vadd.f32 0.0, %v1274
          %v1276 = vpop.f32.mrb[0].mxu0
          %v1277 = vadd.f32 0.0, %v1276
          %1278 = vmatprep.mubr.bf16.mxu0 %v1068
          %1279 = vmatmul.mubr.bf16.gmra.mrb[0].mxu0 %v796
          %v1280 = vpop.f32.mrb[0].mxu0
          %v1281 = vadd.f32 0.0, %v1280
          %v1282 = vpop.f32.mrb[0].mxu0
          %v1283 = vadd.f32 0.0, %v1282
          %v1284 = vpop.f32.mrb[0].mxu0
          %v1285 = vadd.f32 0.0, %v1284
          %v1286 = vpop.f32.mrb[0].mxu0
          %v1287 = vadd.f32 0.0, %v1286
          %1288 = vmatprep.mubr.bf16.mxu0 %v1071
          %1289 = vmatmul.mubr.bf16.gmra.mrb[0].mxu0 %v798
          %v1290 = vpop.f32.mrb[0].mxu0
          %v1291 = vadd.f32 0.0, %v1290
          %v1292 = vpop.f32.mrb[0].mxu0
          %v1293 = vadd.f32 0.0, %v1292
          %v1294 = vpop.f32.mrb[0].mxu0
          %v1295 = vadd.f32 0.0, %v1294
          %v1296 = vpop.f32.mrb[0].mxu0
          %v1297 = vadd.f32 0.0, %v1296
          %1298 = vdwg.mxu0
          %v1299 = vpack.c.bf16 %v1112, %v1108
          %v1300 = vpack.c.bf16 %v1114, %v1110
          %v1301 = vpack.c.bf16 %v1225, %v1221
          %v1302 = vpack.c.bf16 %v1227, %v1223
          %v1303 = vpack.c.bf16 %v1122, %v1118
          %v1304 = vpack.c.bf16 %v1124, %v1120
          %v1305 = vpack.c.bf16 %v1235, %v1231
          %v1306 = vpack.c.bf16 %v1237, %v1233
          %v1307 = vpack.c.bf16 %v1132, %v1128
          %v1308 = vpack.c.bf16 %v1134, %v1130
          %v1309 = vpack.c.bf16 %v1245, %v1241
          %v1310 = vpack.c.bf16 %v1247, %v1243
          %v1311 = vpack.c.bf16 %v1142, %v1138
          %v1312 = vpack.c.bf16 %v1144, %v1140
          %v1313 = vpack.c.bf16 %v1255, %v1251
          %v1314 = vpack.c.bf16 %v1257, %v1253
          %v1315 = vpack.c.bf16 %v1152, %v1148
          %v1316 = vpack.c.bf16 %v1154, %v1150
          %v1317 = vpack.c.bf16 %v1265, %v1261
          %v1318 = vpack.c.bf16 %v1267, %v1263
          %v1319 = vpack.c.bf16 %v1162, %v1158
          %v1320 = vpack.c.bf16 %v1164, %v1160
          %v1321 = vpack.c.bf16 %v1275, %v1271
          %v1322 = vpack.c.bf16 %v1277, %v1273
          %v1323 = vpack.c.bf16 %v1172, %v1168
          %v1324 = vpack.c.bf16 %v1174, %v1170
          %v1325 = vpack.c.bf16 %v1285, %v1281
          %v1326 = vpack.c.bf16 %v1287, %v1283
          %v1327 = vpack.c.bf16 %v1182, %v1178
          %v1328 = vpack.c.bf16 %v1184, %v1180
          %v1329 = vpack.c.bf16 %v1295, %v1291
          %v1330 = vpack.c.bf16 %v1297, %v1293
          %1331 = vst [vmem:[#allocation2] sm:$0xff] %v1299
          %1332 = vst [vmem:[#allocation2 + $0x8] sm:$0xff] %v1300
          %1333 = vst [vmem:[#allocation2 + $0x10] sm:$0xff] %v1301
          %1334 = vst [vmem:[#allocation2 + $0x18] sm:$0xff] %v1302
          %1335 = vst [vmem:[#allocation2 + $0x20] sm:$0xff] %v1303
          %1336 = vst [vmem:[#allocation2 + $0x28] sm:$0xff] %v1304
          %1337 = vst [vmem:[#allocation2 + $0x30] sm:$0xff] %v1305
          %1338 = vst [vmem:[#allocation2 + $0x38] sm:$0xff] %v1306
          %1339 = vst [vmem:[#allocation2 + $0x40] sm:$0xff] %v1307
          %1340 = vst [vmem:[#allocation2 + $0x48] sm:$0xff] %v1308
          %1341 = vst [vmem:[#allocation2 + $0x50] sm:$0xff] %v1309
          %1342 = vst [vmem:[#allocation2 + $0x58] sm:$0xff] %v1310
          %1343 = vst [vmem:[#allocation2 + $0x60] sm:$0xff] %v1311
          %1344 = vst [vmem:[#allocation2 + $0x68] sm:$0xff] %v1312
          %1345 = vst [vmem:[#allocation2 + $0x70] sm:$0xff] %v1313
          %1346 = vst [vmem:[#allocation2 + $0x78] sm:$0xff] %v1314
          %1347 = vst [vmem:[#allocation2 + $0x80] sm:$0xff] %v1315
          %1348 = vst [vmem:[#allocation2 + $0x88] sm:$0xff] %v1316
          %1349 = vst [vmem:[#allocation2 + $0x90] sm:$0xff] %v1317
          %1350 = vst [vmem:[#allocation2 + $0x98] sm:$0xff] %v1318
          %1351 = vst [vmem:[#allocation2 + $0xa0] sm:$0xff] %v1319
          %1352 = vst [vmem:[#allocation2 + $0xa8] sm:$0xff] %v1320
          %1353 = vst [vmem:[#allocation2 + $0xb0] sm:$0xff] %v1321
          %1354 = vst [vmem:[#allocation2 + $0xb8] sm:$0xff] %v1322
          %1355 = vst [vmem:[#allocation2 + $0xc0] sm:$0xff] %v1323
          %1356 = vst [vmem:[#allocation2 + $0xc8] sm:$0xff] %v1324
          %1357 = vst [vmem:[#allocation2 + $0xd0] sm:$0xff] %v1325
          %1358 = vst [vmem:[#allocation2 + $0xd8] sm:$0xff] %v1326
          %1359 = vst [vmem:[#allocation2 + $0xe0] sm:$0xff] %v1327
          %1360 = vst [vmem:[#allocation2 + $0xe8] sm:$0xff] %v1328
          %1361 = vst [vmem:[#allocation2 + $0xf0] sm:$0xff] %v1329
          %1362 = vst [vmem:[#allocation2 + $0xf8] sm:$0xff] %v1330
          %1363 = vst [vmem:[#allocation3] sm:$0xff] 0.0
          %1364 = vst [vmem:[#allocation3 + $0x8] sm:$0xff] 0.0
          %1365 = vst [vmem:[#allocation3 + $0x10] sm:$0xff] 0.0
          %1366 = vst [vmem:[#allocation3 + $0x18] sm:$0xff] 0.0
          %1367 = vst [vmem:[#allocation3 + $0x20] sm:$0xff] 0.0
          %1368 = vst [vmem:[#allocation3 + $0x28] sm:$0xff] 0.0
          %1369 = vst [vmem:[#allocation3 + $0x30] sm:$0xff] 0.0
          %1370 = vst [vmem:[#allocation3 + $0x38] sm:$0xff] 0.0
          %1371 = vst [vmem:[#allocation3 + $0x40] sm:$0xff] 0.0
          %1372 = vst [vmem:[#allocation3 + $0x48] sm:$0xff] 0.0
          %1373 = vst [vmem:[#allocation3 + $0x50] sm:$0xff] 0.0
          %1374 = vst [vmem:[#allocation3 + $0x58] sm:$0xff] 0.0
          %1375 = vst [vmem:[#allocation3 + $0x60] sm:$0xff] 0.0
          %1376 = vst [vmem:[#allocation3 + $0x68] sm:$0xff] 0.0
          %1377 = vst [vmem:[#allocation3 + $0x70] sm:$0xff] 0.0
          %1378 = vst [vmem:[#allocation3 + $0x78] sm:$0xff] 0.0
          %1379 = vst [vmem:[#allocation3 + $0x80] sm:$0xff] 0.0
          %1380 = vst [vmem:[#allocation3 + $0x88] sm:$0xff] 0.0
          %1381 = vst [vmem:[#allocation3 + $0x90] sm:$0xff] 0.0
          %1382 = vst [vmem:[#allocation3 + $0x98] sm:$0xff] 0.0
          %1383 = vst [vmem:[#allocation3 + $0xa0] sm:$0xff] 0.0
          %1384 = vst [vmem:[#allocation3 + $0xa8] sm:$0xff] 0.0
          %1385 = vst [vmem:[#allocation3 + $0xb0] sm:$0xff] 0.0
          %1386 = vst [vmem:[#allocation3 + $0xb8] sm:$0xff] 0.0
          %1387 = vst [vmem:[#allocation3 + $0xc0] sm:$0xff] 0.0
          %1388 = vst [vmem:[#allocation3 + $0xc8] sm:$0xff] 0.0
          %1389 = vst [vmem:[#allocation3 + $0xd0] sm:$0xff] 0.0
          %1390 = vst [vmem:[#allocation3 + $0xd8] sm:$0xff] 0.0
          %1391 = vst [vmem:[#allocation3 + $0xe0] sm:$0xff] 0.0
          %1392 = vst [vmem:[#allocation3 + $0xe8] sm:$0xff] 0.0
          %1393 = vst [vmem:[#allocation3 + $0xf0] sm:$0xff] 0.0
          %1394 = vst [vmem:[#allocation3 + $0xf8] sm:$0xff] 0.0
        $region130: #{share_svd_expert_forward.1} parent=117 // pred_fallthru
          _
        %v1395 = vld [vmem:[#allocation2] sm:$0xff]
        %v1396 = vld [vmem:[#allocation2 + $0x8] sm:$0xff]
        %v1397 = vld [vmem:[#allocation2 + $0x20] sm:$0xff]
        %v1398 = vld [vmem:[#allocation2 + $0x28] sm:$0xff]
        %v1399 = vld [vmem:[#allocation2 + $0x40] sm:$0xff]
        %v1400 = vld [vmem:[#allocation2 + $0x48] sm:$0xff]
        %v1401 = vld [vmem:[#allocation2 + $0x60] sm:$0xff]
        %v1402 = vld [vmem:[#allocation2 + $0x68] sm:$0xff]
        %v1403 = vld [vmem:[#allocation2 + $0x80] sm:$0xff]
        %v1404 = vld [vmem:[#allocation2 + $0x88] sm:$0xff]
        %v1405 = vld [vmem:[#allocation2 + $0xa0] sm:$0xff]
        %v1406 = vld [vmem:[#allocation2 + $0xa8] sm:$0xff]
        %v1407 = vld [vmem:[#allocation2 + $0xc0] sm:$0xff]
        %v1408 = vld [vmem:[#allocation2 + $0xc8] sm:$0xff]
        %v1409 = vld [vmem:[#allocation2 + $0xe0] sm:$0xff]
        %v1410 = vld [vmem:[#allocation2 + $0xe8] sm:$0xff]
        %v1411 = vld [vmem:[%s595] sm:$0xf]
        %v1412 = vld [vmem:[%s595 + $0x4] sm:$0xf]
        %v1413 = vld [vmem:[%s595 + $0x8] sm:$0xf]
        %v1414 = vld [vmem:[%s595 + $0xc] sm:$0xf]
        %v1415 = vld [vmem:[%s595 + $0x10] sm:$0xf]
        %v1416 = vld [vmem:[%s595 + $0x14] sm:$0xf]
        %v1417 = vld [vmem:[%s595 + $0x18] sm:$0xf]
        %v1418 = vld [vmem:[%s595 + $0x1c] sm:$0xf]
        %v1419 = vld [vmem:[%s595 + $0x20] sm:$0xf]
        %v1420 = vld [vmem:[%s595 + $0x24] sm:$0xf]
        %v1421 = vld [vmem:[%s595 + $0x28] sm:$0xf]
        %v1422 = vld [vmem:[%s595 + $0x2c] sm:$0xf]
        %v1423 = vld [vmem:[%s595 + $0x30] sm:$0xf]
        %v1424 = vld [vmem:[%s595 + $0x34] sm:$0xf]
        %v1425 = vld [vmem:[%s595 + $0x38] sm:$0xf]
        %v1426 = vld [vmem:[%s595 + $0x3c] sm:$0xf]
        %v1427 = vld [vmem:[%s595 + $0x40] sm:$0xf]
        %v1428 = vld [vmem:[%s595 + $0x44] sm:$0xf]
        %v1429 = vld [vmem:[%s595 + $0x48] sm:$0xf]
        %v1430 = vld [vmem:[%s595 + $0x4c] sm:$0xf]
        %v1431 = vld [vmem:[%s595 + $0x50] sm:$0xf]
        %v1432 = vld [vmem:[%s595 + $0x54] sm:$0xf]
        %v1433 = vld [vmem:[%s595 + $0x58] sm:$0xf]
        %v1434 = vld [vmem:[%s595 + $0x5c] sm:$0xf]
        %v1435 = vld [vmem:[%s595 + $0x60] sm:$0xf]
        %v1436 = vld [vmem:[%s595 + $0x64] sm:$0xf]
        %v1437 = vld [vmem:[%s595 + $0x68] sm:$0xf]
        %v1438 = vld [vmem:[%s595 + $0x6c] sm:$0xf]
        %v1439 = vld [vmem:[%s595 + $0x70] sm:$0xf]
        %v1440 = vld [vmem:[%s595 + $0x74] sm:$0xf]
        %v1441 = vld [vmem:[%s595 + $0x78] sm:$0xf]
        %v1442 = vld [vmem:[%s595 + $0x7c] sm:$0xf]
        %v1475 = vunpack.c.l.b16 %v1411
        %v1476 = vunpack.c.l.b16 %v1412
        %v1477 = vunpack.c.l.b16 %v1413
        %v1478 = vunpack.c.l.b16 %v1414
        %v1479 = vunpack.c.l.b16 %v1415
        %v1480 = vunpack.c.l.b16 %v1416
        %v1481 = vunpack.c.l.b16 %v1417
        %v1482 = vunpack.c.l.b16 %v1418
        %v1483 = vunpack.c.l.b16 %v1419
        %v1484 = vunpack.c.l.b16 %v1420
        %v1485 = vunpack.c.l.b16 %v1421
        %v1486 = vunpack.c.l.b16 %v1422
        %v1487 = vunpack.c.l.b16 %v1423
        %v1488 = vunpack.c.l.b16 %v1424
        %v1489 = vunpack.c.l.b16 %v1425
        %v1490 = vunpack.c.l.b16 %v1426
        %v1491 = vunpack.c.l.b16 %v1427
        %v1492 = vunpack.c.l.b16 %v1428
        %v1493 = vunpack.c.l.b16 %v1429
        %v1494 = vunpack.c.l.b16 %v1430
        %v1495 = vunpack.c.l.b16 %v1431
        %v1496 = vunpack.c.l.b16 %v1432
        %v1497 = vunpack.c.l.b16 %v1433
        %v1498 = vunpack.c.l.b16 %v1434
        %v1499 = vunpack.c.l.b16 %v1435
        %v1500 = vunpack.c.l.b16 %v1436
        %v1501 = vunpack.c.l.b16 %v1437
        %v1502 = vunpack.c.l.b16 %v1438
        %v1503 = vunpack.c.l.b16 %v1439
        %v1504 = vunpack.c.l.b16 %v1440
        %v1505 = vunpack.c.l.b16 %v1441
        %v1506 = vunpack.c.l.b16 %v1442
        %v1507 = vpack.c.b16 %v1476, %v1475
        %v1508 = vpack.c.b16 %v1478, %v1477
        %v1509 = vpack.c.b16 %v1480, %v1479
        %v1510 = vpack.c.b16 %v1482, %v1481
        %v1511 = vpack.c.b16 %v1484, %v1483
        %v1512 = vpack.c.b16 %v1486, %v1485
        %v1513 = vpack.c.b16 %v1488, %v1487
        %v1514 = vpack.c.b16 %v1490, %v1489
        %v1515 = vpack.c.b16 %v1492, %v1491
        %v1516 = vpack.c.b16 %v1494, %v1493
        %v1517 = vpack.c.b16 %v1496, %v1495
        %v1518 = vpack.c.b16 %v1498, %v1497
        %v1519 = vpack.c.b16 %v1500, %v1499
        %v1520 = vpack.c.b16 %v1502, %v1501
        %v1521 = vpack.c.b16 %v1504, %v1503
        %v1522 = vpack.c.b16 %v1506, %v1505
        %1539 = vmatprep.subr.bf16.mxu0 0
        %1540 = vmatpush1.bf16.msra.mxu0 %v1507
        %1541 = vmatprep.subr.bf16.mxu0 0
        %1542 = vmatpush1.bf16.msra.mxu0 %v1508
        %1543 = vmatprep.subr.bf16.mxu0 0
        %1544 = vmatpush1.bf16.msra.mxu0 %v1509
        %1545 = vmatprep.subr.bf16.mxu0 0
        %1546 = vmatpush1.bf16.msra.mxu0 %v1510
        %1547 = vmatprep.subr.bf16.mxu0 0
        %1548 = vmatpush1.bf16.msra.mxu0 %v1511
        %1549 = vmatprep.subr.bf16.mxu0 0
        %1550 = vmatpush1.bf16.msra.mxu0 %v1512
        %1551 = vmatprep.subr.bf16.mxu0 0
        %1552 = vmatpush1.bf16.msra.mxu0 %v1513
        %1553 = vmatprep.subr.bf16.mxu0 0
        %1554 = vmatpush1.bf16.msra.mxu0 %v1514
        %1555 = vmatprep.subr.bf16.mxu0 0
        %1556 = vmatpush1.bf16.msra.mxu0 %v1515
        %1557 = vmatprep.subr.bf16.mxu0 0
        %1558 = vmatpush1.bf16.msra.mxu0 %v1516
        %1559 = vmatprep.subr.bf16.mxu0 0
        %1560 = vmatpush1.bf16.msra.mxu0 %v1517
        %1561 = vmatprep.subr.bf16.mxu0 0
        %1562 = vmatpush1.bf16.msra.mxu0 %v1518
        %1563 = vmatprep.subr.bf16.mxu0 0
        %1564 = vmatpush1.bf16.msra.mxu0 %v1519
        %1565 = vmatprep.subr.bf16.mxu0 0
        %1566 = vmatpush1.bf16.msra.mxu0 %v1520
        %1567 = vmatprep.subr.bf16.mxu0 0
        %1568 = vmatpush1.bf16.msra.mxu0 %v1521
        %1569 = vmatprep.subr.bf16.mxu0 0
        %1570 = vmatpush1.bf16.msra.mxu0 %v1522
        %1571 = vmatprep.mubr.bf16.mxu0 %v1396
        %1572 = vmatmul.mubr.bf16.gmra.mrb[0].mxu0 %v1395
        %v1573 = vpop.f32.mrb[0].mxu0
        %v1574 = vadd.f32 0.0, %v1573
        %v1575 = vpop.f32.mrb[0].mxu0
        %v1576 = vpop.f32.mrb[0].mxu0
        %v1577 = vadd.f32 0.0, %v1576
        %v1578 = vpop.f32.mrb[0].mxu0
        %1579 = vmatprep.mubr.bf16.mxu0 %v1398
        %1580 = vmatmul.mubr.bf16.gmra.mrb[0].mxu0 %v1397
        %v1581 = vpop.f32.mrb[0].mxu0
        %v1582 = vadd.f32 0.0, %v1581
        %v1583 = vpop.f32.mrb[0].mxu0
        %v1584 = vpop.f32.mrb[0].mxu0
        %v1585 = vadd.f32 0.0, %v1584
        %v1586 = vpop.f32.mrb[0].mxu0
        %1587 = vmatprep.mubr.bf16.mxu0 %v1400
        %1588 = vmatmul.mubr.bf16.gmra.mrb[0].mxu0 %v1399
        %v1589 = vpop.f32.mrb[0].mxu0
        %v1590 = vadd.f32 0.0, %v1589
        %v1591 = vpop.f32.mrb[0].mxu0
        %v1592 = vpop.f32.mrb[0].mxu0
        %v1593 = vadd.f32 0.0, %v1592
        %v1594 = vpop.f32.mrb[0].mxu0
        %1595 = vmatprep.mubr.bf16.mxu0 %v1402
        %1596 = vmatmul.mubr.bf16.gmra.mrb[0].mxu0 %v1401
        %v1597 = vpop.f32.mrb[0].mxu0
        %v1598 = vadd.f32 0.0, %v1597
        %v1599 = vpop.f32.mrb[0].mxu0
        %v1600 = vpop.f32.mrb[0].mxu0
        %v1601 = vadd.f32 0.0, %v1600
        %v1602 = vpop.f32.mrb[0].mxu0
        %1603 = vmatprep.mubr.bf16.mxu0 %v1404
        %1604 = vmatmul.mubr.bf16.gmra.mrb[0].mxu0 %v1403
        %v1605 = vpop.f32.mrb[0].mxu0
        %v1606 = vadd.f32 0.0, %v1605
        %v1607 = vpop.f32.mrb[0].mxu0
        %v1608 = vpop.f32.mrb[0].mxu0
        %v1609 = vadd.f32 0.0, %v1608
        %v1610 = vpop.f32.mrb[0].mxu0
        %1611 = vmatprep.mubr.bf16.mxu0 %v1406
        %1612 = vmatmul.mubr.bf16.gmra.mrb[0].mxu0 %v1405
        %v1613 = vpop.f32.mrb[0].mxu0
        %v1614 = vadd.f32 0.0, %v1613
        %v1615 = vpop.f32.mrb[0].mxu0
        %v1616 = vpop.f32.mrb[0].mxu0
        %v1617 = vadd.f32 0.0, %v1616
        %v1618 = vpop.f32.mrb[0].mxu0
        %1619 = vmatprep.mubr.bf16.mxu0 %v1408
        %1620 = vmatmul.mubr.bf16.gmra.mrb[0].mxu0 %v1407
        %v1621 = vpop.f32.mrb[0].mxu0
        %v1622 = vadd.f32 0.0, %v1621
        %v1623 = vpop.f32.mrb[0].mxu0
        %v1624 = vpop.f32.mrb[0].mxu0
        %v1625 = vadd.f32 0.0, %v1624
        %v1626 = vpop.f32.mrb[0].mxu0
        %1627 = vmatprep.mubr.bf16.mxu0 %v1410
        %1628 = vmatmul.mubr.bf16.gmra.mrb[0].mxu0 %v1409
        %v1629 = vpop.f32.mrb[0].mxu0
        %v1630 = vadd.f32 0.0, %v1629
        %v1631 = vpop.f32.mrb[0].mxu0
        %v1632 = vpop.f32.mrb[0].mxu0
        %v1633 = vadd.f32 0.0, %v1632
        %v1634 = vpop.f32.mrb[0].mxu0
        %1635 = vdwg.mxu0
        %v1636 = vld [vmem:[#allocation2 + $0x10] sm:$0xff]
        %v1637 = vld [vmem:[#allocation2 + $0x18] sm:$0xff]
        %v1638 = vld [vmem:[#allocation2 + $0x30] sm:$0xff]
        %v1639 = vld [vmem:[#allocation2 + $0x38] sm:$0xff]
        %v1640 = vld [vmem:[#allocation2 + $0x50] sm:$0xff]
        %v1641 = vld [vmem:[#allocation2 + $0x58] sm:$0xff]
        %v1642 = vld [vmem:[#allocation2 + $0x70] sm:$0xff]
        %v1643 = vld [vmem:[#allocation2 + $0x78] sm:$0xff]
        %v1644 = vld [vmem:[#allocation2 + $0x90] sm:$0xff]
        %v1645 = vld [vmem:[#allocation2 + $0x98] sm:$0xff]
        %v1646 = vld [vmem:[#allocation2 + $0xb0] sm:$0xff]
        %v1647 = vld [vmem:[#allocation2 + $0xb8] sm:$0xff]
        %v1648 = vld [vmem:[#allocation2 + $0xd0] sm:$0xff]
        %v1649 = vld [vmem:[#allocation2 + $0xd8] sm:$0xff]
        %v1650 = vld [vmem:[#allocation2 + $0xf0] sm:$0xff]
        %v1651 = vld [vmem:[#allocation2 + $0xf8] sm:$0xff]
        %v1652 = vld [vmem:[%s602] sm:$0xf]
        %v1653 = vld [vmem:[%s602 + $0x4] sm:$0xf]
        %v1654 = vld [vmem:[%s602 + $0x8] sm:$0xf]
        %v1655 = vld [vmem:[%s602 + $0xc] sm:$0xf]
        %v1656 = vld [vmem:[%s602 + $0x10] sm:$0xf]
        %v1657 = vld [vmem:[%s602 + $0x14] sm:$0xf]
        %v1658 = vld [vmem:[%s602 + $0x18] sm:$0xf]
        %v1659 = vld [vmem:[%s602 + $0x1c] sm:$0xf]
        %v1660 = vld [vmem:[%s602 + $0x20] sm:$0xf]
        %v1661 = vld [vmem:[%s602 + $0x24] sm:$0xf]
        %v1662 = vld [vmem:[%s602 + $0x28] sm:$0xf]
        %v1663 = vld [vmem:[%s602 + $0x2c] sm:$0xf]
        %v1664 = vld [vmem:[%s602 + $0x30] sm:$0xf]
        %v1665 = vld [vmem:[%s602 + $0x34] sm:$0xf]
        %v1666 = vld [vmem:[%s602 + $0x38] sm:$0xf]
        %v1667 = vld [vmem:[%s602 + $0x3c] sm:$0xf]
        %v1668 = vld [vmem:[%s602 + $0x40] sm:$0xf]
        %v1669 = vld [vmem:[%s602 + $0x44] sm:$0xf]
        %v1670 = vld [vmem:[%s602 + $0x48] sm:$0xf]
        %v1671 = vld [vmem:[%s602 + $0x4c] sm:$0xf]
        %v1672 = vld [vmem:[%s602 + $0x50] sm:$0xf]
        %v1673 = vld [vmem:[%s602 + $0x54] sm:$0xf]
        %v1674 = vld [vmem:[%s602 + $0x58] sm:$0xf]
        %v1675 = vld [vmem:[%s602 + $0x5c] sm:$0xf]
        %v1676 = vld [vmem:[%s602 + $0x60] sm:$0xf]
        %v1677 = vld [vmem:[%s602 + $0x64] sm:$0xf]
        %v1678 = vld [vmem:[%s602 + $0x68] sm:$0xf]
        %v1679 = vld [vmem:[%s602 + $0x6c] sm:$0xf]
        %v1680 = vld [vmem:[%s602 + $0x70] sm:$0xf]
        %v1681 = vld [vmem:[%s602 + $0x74] sm:$0xf]
        %v1682 = vld [vmem:[%s602 + $0x78] sm:$0xf]
        %v1683 = vld [vmem:[%s602 + $0x7c] sm:$0xf]
        %v1716 = vunpack.c.l.b16 %v1652
        %v1717 = vunpack.c.l.b16 %v1653
        %v1718 = vunpack.c.l.b16 %v1654
        %v1719 = vunpack.c.l.b16 %v1655
        %v1720 = vunpack.c.l.b16 %v1656
        %v1721 = vunpack.c.l.b16 %v1657
        %v1722 = vunpack.c.l.b16 %v1658
        %v1723 = vunpack.c.l.b16 %v1659
        %v1724 = vunpack.c.l.b16 %v1660
        %v1725 = vunpack.c.l.b16 %v1661
        %v1726 = vunpack.c.l.b16 %v1662
        %v1727 = vunpack.c.l.b16 %v1663
        %v1728 = vunpack.c.l.b16 %v1664
        %v1729 = vunpack.c.l.b16 %v1665
        %v1730 = vunpack.c.l.b16 %v1666
        %v1731 = vunpack.c.l.b16 %v1667
        %v1732 = vunpack.c.l.b16 %v1668
        %v1733 = vunpack.c.l.b16 %v1669
        %v1734 = vunpack.c.l.b16 %v1670
        %v1735 = vunpack.c.l.b16 %v1671
        %v1736 = vunpack.c.l.b16 %v1672
        %v1737 = vunpack.c.l.b16 %v1673
        %v1738 = vunpack.c.l.b16 %v1674
        %v1739 = vunpack.c.l.b16 %v1675
        %v1740 = vunpack.c.l.b16 %v1676
        %v1741 = vunpack.c.l.b16 %v1677
        %v1742 = vunpack.c.l.b16 %v1678
        %v1743 = vunpack.c.l.b16 %v1679
        %v1744 = vunpack.c.l.b16 %v1680
        %v1745 = vunpack.c.l.b16 %v1681
        %v1746 = vunpack.c.l.b16 %v1682
        %v1747 = vunpack.c.l.b16 %v1683
        %v1748 = vpack.c.b16 %v1717, %v1716
        %v1749 = vpack.c.b16 %v1719, %v1718
        %v1750 = vpack.c.b16 %v1721, %v1720
        %v1751 = vpack.c.b16 %v1723, %v1722
        %v1752 = vpack.c.b16 %v1725, %v1724
        %v1753 = vpack.c.b16 %v1727, %v1726
        %v1754 = vpack.c.b16 %v1729, %v1728
        %v1755 = vpack.c.b16 %v1731, %v1730
        %v1756 = vpack.c.b16 %v1733, %v1732
        %v1757 = vpack.c.b16 %v1735, %v1734
        %v1758 = vpack.c.b16 %v1737, %v1736
        %v1759 = vpack.c.b16 %v1739, %v1738
        %v1760 = vpack.c.b16 %v1741, %v1740
        %v1761 = vpack.c.b16 %v1743, %v1742
        %v1762 = vpack.c.b16 %v1745, %v1744
        %v1763 = vpack.c.b16 %v1747, %v1746
        %1780 = vmatprep.subr.bf16.mxu0 0
        %1781 = vmatpush1.bf16.msra.mxu0 %v1748
        %1782 = vmatprep.subr.bf16.mxu0 0
        %1783 = vmatpush1.bf16.msra.mxu0 %v1749
        %1784 = vmatprep.subr.bf16.mxu0 0
        %1785 = vmatpush1.bf16.msra.mxu0 %v1750
        %1786 = vmatprep.subr.bf16.mxu0 0
        %1787 = vmatpush1.bf16.msra.mxu0 %v1751
        %1788 = vmatprep.subr.bf16.mxu0 0
        %1789 = vmatpush1.bf16.msra.mxu0 %v1752
        %1790 = vmatprep.subr.bf16.mxu0 0
        %1791 = vmatpush1.bf16.msra.mxu0 %v1753
        %1792 = vmatprep.subr.bf16.mxu0 0
        %1793 = vmatpush1.bf16.msra.mxu0 %v1754
        %1794 = vmatprep.subr.bf16.mxu0 0
        %1795 = vmatpush1.bf16.msra.mxu0 %v1755
        %1796 = vmatprep.subr.bf16.mxu0 0
        %1797 = vmatpush1.bf16.msra.mxu0 %v1756
        %1798 = vmatprep.subr.bf16.mxu0 0
        %1799 = vmatpush1.bf16.msra.mxu0 %v1757
        %1800 = vmatprep.subr.bf16.mxu0 0
        %1801 = vmatpush1.bf16.msra.mxu0 %v1758
        %1802 = vmatprep.subr.bf16.mxu0 0
        %1803 = vmatpush1.bf16.msra.mxu0 %v1759
        %1804 = vmatprep.subr.bf16.mxu0 0
        %1805 = vmatpush1.bf16.msra.mxu0 %v1760
        %1806 = vmatprep.subr.bf16.mxu0 0
        %1807 = vmatpush1.bf16.msra.mxu0 %v1761
        %1808 = vmatprep.subr.bf16.mxu0 0
        %1809 = vmatpush1.bf16.msra.mxu0 %v1762
        %1810 = vmatprep.subr.bf16.mxu0 0
        %1811 = vmatpush1.bf16.msra.mxu0 %v1763
        %1812 = vmatprep.mubr.bf16.mxu0 %v1637
        %1813 = vmatmul.mubr.bf16.gmra.mrb[0].mxu0 %v1636
        %v1814 = vpop.f32.mrb[0].mxu0
        %v1815 = vadd.f32 0.0, %v1814
        %v1816 = vpop.f32.mrb[0].mxu0
        %v1817 = vpop.f32.mrb[0].mxu0
        %v1818 = vadd.f32 0.0, %v1817
        %v1819 = vpop.f32.mrb[0].mxu0
        %1820 = vmatprep.mubr.bf16.mxu0 %v1639
        %1821 = vmatmul.mubr.bf16.gmra.mrb[0].mxu0 %v1638
        %v1822 = vpop.f32.mrb[0].mxu0
        %v1823 = vadd.f32 0.0, %v1822
        %v1824 = vpop.f32.mrb[0].mxu0
        %v1825 = vpop.f32.mrb[0].mxu0
        %v1826 = vadd.f32 0.0, %v1825
        %v1827 = vpop.f32.mrb[0].mxu0
        %1828 = vmatprep.mubr.bf16.mxu0 %v1641
        %1829 = vmatmul.mubr.bf16.gmra.mrb[0].mxu0 %v1640
        %v1830 = vpop.f32.mrb[0].mxu0
        %v1831 = vadd.f32 0.0, %v1830
        %v1832 = vpop.f32.mrb[0].mxu0
        %v1833 = vpop.f32.mrb[0].mxu0
        %v1834 = vadd.f32 0.0, %v1833
        %v1835 = vpop.f32.mrb[0].mxu0
        %1836 = vmatprep.mubr.bf16.mxu0 %v1643
        %1837 = vmatmul.mubr.bf16.gmra.mrb[0].mxu0 %v1642
        %v1838 = vpop.f32.mrb[0].mxu0
        %v1839 = vadd.f32 0.0, %v1838
        %v1840 = vpop.f32.mrb[0].mxu0
        %v1841 = vpop.f32.mrb[0].mxu0
        %v1842 = vadd.f32 0.0, %v1841
        %v1843 = vpop.f32.mrb[0].mxu0
        %1844 = vmatprep.mubr.bf16.mxu0 %v1645
        %1845 = vmatmul.mubr.bf16.gmra.mrb[0].mxu0 %v1644
        %v1846 = vpop.f32.mrb[0].mxu0
        %v1847 = vadd.f32 0.0, %v1846
        %v1848 = vpop.f32.mrb[0].mxu0
        %v1849 = vpop.f32.mrb[0].mxu0
        %v1850 = vadd.f32 0.0, %v1849
        %v1851 = vpop.f32.mrb[0].mxu0
        %1852 = vmatprep.mubr.bf16.mxu0 %v1647
        %1853 = vmatmul.mubr.bf16.gmra.mrb[0].mxu0 %v1646
        %v1854 = vpop.f32.mrb[0].mxu0
        %v1855 = vadd.f32 0.0, %v1854
        %v1856 = vpop.f32.mrb[0].mxu0
        %v1857 = vpop.f32.mrb[0].mxu0
        %v1858 = vadd.f32 0.0, %v1857
        %v1859 = vpop.f32.mrb[0].mxu0
        %1860 = vmatprep.mubr.bf16.mxu0 %v1649
        %1861 = vmatmul.mubr.bf16.gmra.mrb[0].mxu0 %v1648
        %v1862 = vpop.f32.mrb[0].mxu0
        %v1863 = vadd.f32 0.0, %v1862
        %v1864 = vpop.f32.mrb[0].mxu0
        %v1865 = vpop.f32.mrb[0].mxu0
        %v1866 = vadd.f32 0.0, %v1865
        %v1867 = vpop.f32.mrb[0].mxu0
        %1868 = vmatprep.mubr.bf16.mxu0 %v1651
        %1869 = vmatmul.mubr.bf16.gmra.mrb[0].mxu0 %v1650
        %v1870 = vpop.f32.mrb[0].mxu0
        %v1871 = vadd.f32 0.0, %v1870
        %v1872 = vpop.f32.mrb[0].mxu0
        %v1873 = vpop.f32.mrb[0].mxu0
        %v1874 = vadd.f32 0.0, %v1873
        %v1875 = vpop.f32.mrb[0].mxu0
        %1876 = vdwg.mxu0
        %v1877 = vxor.u32 %v1574, 2147483648
        %v1878 = vxor.u32 %v1577, 2147483648
        %v1879 = vxor.u32 %v1582, 2147483648
        %v1880 = vxor.u32 %v1585, 2147483648
        %v1881 = vxor.u32 %v1590, 2147483648
        %v1882 = vxor.u32 %v1593, 2147483648
        %v1883 = vxor.u32 %v1598, 2147483648
        %v1884 = vxor.u32 %v1601, 2147483648
        %v1885 = vxor.u32 %v1606, 2147483648
        %v1886 = vxor.u32 %v1609, 2147483648
        %v1887 = vxor.u32 %v1614, 2147483648
        %v1888 = vxor.u32 %v1617, 2147483648
        %v1889 = vxor.u32 %v1622, 2147483648
        %v1890 = vxor.u32 %v1625, 2147483648
        %v1891 = vxor.u32 %v1630, 2147483648
        %v1892 = vxor.u32 %v1633, 2147483648
        %v1893 = vmul.f32 %v1877, 1.442695
        %v1894 = vpow.pop %v1893
        %v1895 = vmul.f32 %v1878, 1.442695
        %v1896 = vpow.pop %v1895
        %v1897 = vmul.f32 %v1879, 1.442695
        %v1898 = vpow.pop %v1897
        %v1899 = vmul.f32 %v1880, 1.442695
        %v1900 = vpow.pop %v1899
        %v1901 = vmul.f32 %v1881, 1.442695
        %v1902 = vpow.pop %v1901
        %v1903 = vmul.f32 %v1882, 1.442695
        %v1904 = vpow.pop %v1903
        %v1905 = vmul.f32 %v1883, 1.442695
        %v1906 = vpow.pop %v1905
        %v1907 = vmul.f32 %v1884, 1.442695
        %v1908 = vpow.pop %v1907
        %v1909 = vmul.f32 %v1885, 1.442695
        %v1910 = vpow.pop %v1909
        %v1911 = vmul.f32 %v1886, 1.442695
        %v1912 = vpow.pop %v1911
        %v1913 = vmul.f32 %v1887, 1.442695
        %v1914 = vpow.pop %v1913
        %v1915 = vmul.f32 %v1888, 1.442695
        %v1916 = vpow.pop %v1915
        %v1917 = vmul.f32 %v1889, 1.442695
        %v1918 = vpow.pop %v1917
        %v1919 = vmul.f32 %v1890, 1.442695
        %v1920 = vpow.pop %v1919
        %v1921 = vmul.f32 %v1891, 1.442695
        %v1922 = vpow.pop %v1921
        %v1923 = vmul.f32 %v1892, 1.442695
        %v1924 = vpow.pop %v1923
        %v1925 = vadd.f32 %v1894, 1.0
        %v1926 = vadd.f32 %v1896, 1.0
        %v1927 = vadd.f32 %v1898, 1.0
        %v1928 = vadd.f32 %v1900, 1.0
        %v1929 = vadd.f32 %v1902, 1.0
        %v1930 = vadd.f32 %v1904, 1.0
        %v1931 = vadd.f32 %v1906, 1.0
        %v1932 = vadd.f32 %v1908, 1.0
        %v1933 = vadd.f32 %v1910, 1.0
        %v1934 = vadd.f32 %v1912, 1.0
        %v1935 = vadd.f32 %v1914, 1.0
        %v1936 = vadd.f32 %v1916, 1.0
        %v1937 = vadd.f32 %v1918, 1.0
        %v1938 = vadd.f32 %v1920, 1.0
        %v1939 = vadd.f32 %v1922, 1.0
        %v1940 = vadd.f32 %v1924, 1.0
        %v1941 = vrcp.pop %v1925
        %v1942 = vmul.f32 1.0, %v1941
        %v1943 = vrcp.pop %v1926
        %v1944 = vmul.f32 1.0, %v1943
        %v1945 = vrcp.pop %v1927
        %v1946 = vmul.f32 1.0, %v1945
        %v1947 = vrcp.pop %v1928
        %v1948 = vmul.f32 1.0, %v1947
        %v1949 = vrcp.pop %v1929
        %v1950 = vmul.f32 1.0, %v1949
        %v1951 = vrcp.pop %v1930
        %v1952 = vmul.f32 1.0, %v1951
        %v1953 = vrcp.pop %v1931
        %v1954 = vmul.f32 1.0, %v1953
        %v1955 = vrcp.pop %v1932
        %v1956 = vmul.f32 1.0, %v1955
        %v1957 = vrcp.pop %v1933
        %v1958 = vmul.f32 1.0, %v1957
        %v1959 = vrcp.pop %v1934
        %v1960 = vmul.f32 1.0, %v1959
        %v1961 = vrcp.pop %v1935
        %v1962 = vmul.f32 1.0, %v1961
        %v1963 = vrcp.pop %v1936
        %v1964 = vmul.f32 1.0, %v1963
        %v1965 = vrcp.pop %v1937
        %v1966 = vmul.f32 1.0, %v1965
        %v1967 = vrcp.pop %v1938
        %v1968 = vmul.f32 1.0, %v1967
        %v1969 = vrcp.pop %v1939
        %v1970 = vmul.f32 1.0, %v1969
        %v1971 = vrcp.pop %v1940
        %v1972 = vmul.f32 1.0, %v1971
        %v1973 = vmul.f32 %v1574, %v1942
        %v1974 = vmul.f32 %v1577, %v1944
        %v1975 = vmul.f32 %v1582, %v1946
        %v1976 = vmul.f32 %v1585, %v1948
        %v1977 = vmul.f32 %v1590, %v1950
        %v1978 = vmul.f32 %v1593, %v1952
        %v1979 = vmul.f32 %v1598, %v1954
        %v1980 = vmul.f32 %v1601, %v1956
        %v1981 = vmul.f32 %v1606, %v1958
        %v1982 = vmul.f32 %v1609, %v1960
        %v1983 = vmul.f32 %v1614, %v1962
        %v1984 = vmul.f32 %v1617, %v1964
        %v1985 = vmul.f32 %v1622, %v1966
        %v1986 = vmul.f32 %v1625, %v1968
        %v1987 = vmul.f32 %v1630, %v1970
        %v1988 = vmul.f32 %v1633, %v1972
        %v1989 = vmul.f32 %v1973, %v1815
        %v1990 = vmul.f32 %v1974, %v1818
        %v1991 = vmul.f32 %v1975, %v1823
        %v1992 = vmul.f32 %v1976, %v1826
        %v1993 = vmul.f32 %v1977, %v1831
        %v1994 = vmul.f32 %v1978, %v1834
        %v1995 = vmul.f32 %v1979, %v1839
        %v1996 = vmul.f32 %v1980, %v1842
        %v1997 = vmul.f32 %v1981, %v1847
        %v1998 = vmul.f32 %v1982, %v1850
        %v1999 = vmul.f32 %v1983, %v1855
        %v2000 = vmul.f32 %v1984, %v1858
        %v2001 = vmul.f32 %v1985, %v1863
        %v2002 = vmul.f32 %v1986, %v1866
        %v2003 = vmul.f32 %v1987, %v1871
        %v2004 = vmul.f32 %v1988, %v1874
        %v2005 = vpack.c.bf16 %v1990, %v1989
        %v2006 = vpack.c.bf16 %v1992, %v1991
        %v2007 = vpack.c.bf16 %v1994, %v1993
        %v2008 = vpack.c.bf16 %v1996, %v1995
        %v2009 = vpack.c.bf16 %v1998, %v1997
        %v2010 = vpack.c.bf16 %v2000, %v1999
        %v2011 = vpack.c.bf16 %v2002, %v2001
        %v2012 = vpack.c.bf16 %v2004, %v2003
        %v2013 = vld [vmem:[#allocation3] sm:$0xff]
        %v2014 = vld [vmem:[#allocation3 + $0x8] sm:$0xff]
        %v2015 = vld [vmem:[#allocation3 + $0x10] sm:$0xff]
        %v2016 = vld [vmem:[#allocation3 + $0x18] sm:$0xff]
        %v2017 = vld [vmem:[#allocation3 + $0x20] sm:$0xff]
        %v2018 = vld [vmem:[#allocation3 + $0x28] sm:$0xff]
        %v2019 = vld [vmem:[#allocation3 + $0x30] sm:$0xff]
        %v2020 = vld [vmem:[#allocation3 + $0x38] sm:$0xff]
        %v2021 = vld [vmem:[#allocation3 + $0x40] sm:$0xff]
        %v2022 = vld [vmem:[#allocation3 + $0x48] sm:$0xff]
        %v2023 = vld [vmem:[#allocation3 + $0x50] sm:$0xff]
        %v2024 = vld [vmem:[#allocation3 + $0x58] sm:$0xff]
        %v2025 = vld [vmem:[#allocation3 + $0x60] sm:$0xff]
        %v2026 = vld [vmem:[#allocation3 + $0x68] sm:$0xff]
        %v2027 = vld [vmem:[#allocation3 + $0x70] sm:$0xff]
        %v2028 = vld [vmem:[#allocation3 + $0x78] sm:$0xff]
        %v2029 = vld [vmem:[#allocation3 + $0x80] sm:$0xff]
        %v2030 = vld [vmem:[#allocation3 + $0x88] sm:$0xff]
        %v2031 = vld [vmem:[#allocation3 + $0x90] sm:$0xff]
        %v2032 = vld [vmem:[#allocation3 + $0x98] sm:$0xff]
        %v2033 = vld [vmem:[#allocation3 + $0xa0] sm:$0xff]
        %v2034 = vld [vmem:[#allocation3 + $0xa8] sm:$0xff]
        %v2035 = vld [vmem:[#allocation3 + $0xb0] sm:$0xff]
        %v2036 = vld [vmem:[#allocation3 + $0xb8] sm:$0xff]
        %v2037 = vld [vmem:[#allocation3 + $0xc0] sm:$0xff]
        %v2038 = vld [vmem:[#allocation3 + $0xc8] sm:$0xff]
        %v2039 = vld [vmem:[#allocation3 + $0xd0] sm:$0xff]
        %v2040 = vld [vmem:[#allocation3 + $0xd8] sm:$0xff]
        %v2041 = vld [vmem:[#allocation3 + $0xe0] sm:$0xff]
        %v2042 = vld [vmem:[#allocation3 + $0xe8] sm:$0xff]
        %v2043 = vld [vmem:[#allocation3 + $0xf0] sm:$0xff]
        %v2044 = vld [vmem:[#allocation3 + $0xf8] sm:$0xff]
        %v2045 = vld [vmem:[%s658] sm:$0xff]
        %v2046 = vld [vmem:[%s658 + $0x8] sm:$0xff]
        %v2047 = vld [vmem:[%s658 + $0x10] sm:$0xff]
        %v2048 = vld [vmem:[%s658 + $0x18] sm:$0xff]
        %v2049 = vld [vmem:[%s658 + $0x20] sm:$0xff]
        %v2050 = vld [vmem:[%s658 + $0x28] sm:$0xff]
        %v2051 = vld [vmem:[%s658 + $0x30] sm:$0xff]
        %v2052 = vld [vmem:[%s658 + $0x38] sm:$0xff]
        %v2053 = vld [vmem:[%s658 + $0x40] sm:$0xff]
        %v2054 = vld [vmem:[%s658 + $0x48] sm:$0xff]
        %v2055 = vld [vmem:[%s658 + $0x50] sm:$0xff]
        %v2056 = vld [vmem:[%s658 + $0x58] sm:$0xff]
        %v2057 = vld [vmem:[%s658 + $0x60] sm:$0xff]
        %v2058 = vld [vmem:[%s658 + $0x68] sm:$0xff]
        %v2059 = vld [vmem:[%s658 + $0x70] sm:$0xff]
        %v2060 = vld [vmem:[%s658 + $0x78] sm:$0xff]
        %v2077 = vunpack.c.l.b16 %v2045
        %v2078 = vunpack.c.h.b16 %v2045
        %v2079 = vunpack.c.l.b16 %v2046
        %v2080 = vunpack.c.h.b16 %v2046
        %v2081 = vunpack.c.l.b16 %v2047
        %v2082 = vunpack.c.h.b16 %v2047
        %v2083 = vunpack.c.l.b16 %v2048
        %v2084 = vunpack.c.h.b16 %v2048
        %v2085 = vunpack.c.l.b16 %v2049
        %v2086 = vunpack.c.h.b16 %v2049
        %v2087 = vunpack.c.l.b16 %v2050
        %v2088 = vunpack.c.h.b16 %v2050
        %v2089 = vunpack.c.l.b16 %v2051
        %v2090 = vunpack.c.h.b16 %v2051
        %v2091 = vunpack.c.l.b16 %v2052
        %v2092 = vunpack.c.h.b16 %v2052
        %v2093 = vunpack.c.l.b16 %v2053
        %v2094 = vunpack.c.h.b16 %v2053
        %v2095 = vunpack.c.l.b16 %v2054
        %v2096 = vunpack.c.h.b16 %v2054
        %v2097 = vunpack.c.l.b16 %v2055
        %v2098 = vunpack.c.h.b16 %v2055
        %v2099 = vunpack.c.l.b16 %v2056
        %v2100 = vunpack.c.h.b16 %v2056
        %v2101 = vunpack.c.l.b16 %v2057
        %v2102 = vunpack.c.h.b16 %v2057
        %v2103 = vunpack.c.l.b16 %v2058
        %v2104 = vunpack.c.h.b16 %v2058
        %v2105 = vunpack.c.l.b16 %v2059
        %v2106 = vunpack.c.h.b16 %v2059
        %v2107 = vunpack.c.l.b16 %v2060
        %v2108 = vunpack.c.h.b16 %v2060
        %v2109 = vpack.c.b16 %v2079, %v2077
        %v2110 = vpack.c.b16 %v2080, %v2078
        %v2111 = vpack.c.b16 %v2083, %v2081
        %v2112 = vpack.c.b16 %v2084, %v2082
        %v2113 = vpack.c.b16 %v2087, %v2085
        %v2114 = vpack.c.b16 %v2088, %v2086
        %v2115 = vpack.c.b16 %v2091, %v2089
        %v2116 = vpack.c.b16 %v2092, %v2090
        %v2117 = vpack.c.b16 %v2095, %v2093
        %v2118 = vpack.c.b16 %v2096, %v2094
        %v2119 = vpack.c.b16 %v2099, %v2097
        %v2120 = vpack.c.b16 %v2100, %v2098
        %v2121 = vpack.c.b16 %v2103, %v2101
        %v2122 = vpack.c.b16 %v2104, %v2102
        %v2123 = vpack.c.b16 %v2107, %v2105
        %v2124 = vpack.c.b16 %v2108, %v2106
        %2141 = vmatprep.subr.bf16.mxu0 %v2110
        %2142 = vmatpush1.bf16.msra.mxu0 %v2109
        %2143 = vmatprep.subr.bf16.mxu0 %v2112
        %2144 = vmatpush1.bf16.msra.mxu0 %v2111
        %2145 = vmatprep.subr.bf16.mxu0 %v2114
        %2146 = vmatpush1.bf16.msra.mxu0 %v2113
        %2147 = vmatprep.subr.bf16.mxu0 %v2116
        %2148 = vmatpush1.bf16.msra.mxu0 %v2115
        %2149 = vmatprep.subr.bf16.mxu0 %v2118
        %2150 = vmatpush1.bf16.msra.mxu0 %v2117
        %2151 = vmatprep.subr.bf16.mxu0 %v2120
        %2152 = vmatpush1.bf16.msra.mxu0 %v2119
        %2153 = vmatprep.subr.bf16.mxu0 %v2122
        %2154 = vmatpush1.bf16.msra.mxu0 %v2121
        %2155 = vmatprep.subr.bf16.mxu0 %v2124
        %2156 = vmatpush1.bf16.msra.mxu0 %v2123
        %2157 = vmatprep.subr.bf16.mxu0 0
        %2158 = vmatpush1.bf16.msra.mxu0 0
        %2159 = vmatprep.subr.bf16.mxu0 0
        %2160 = vmatpush1.bf16.msra.mxu0 0
        %2161 = vmatprep.subr.bf16.mxu0 0
        %2162 = vmatpush1.bf16.msra.mxu0 0
        %2163 = vmatprep.subr.bf16.mxu0 0
        %2164 = vmatpush1.bf16.msra.mxu0 0
        %2165 = vmatprep.subr.bf16.mxu0 0
        %2166 = vmatpush1.bf16.msra.mxu0 0
        %2167 = vmatprep.subr.bf16.mxu0 0
        %2168 = vmatpush1.bf16.msra.mxu0 0
        %2169 = vmatprep.subr.bf16.mxu0 0
        %2170 = vmatpush1.bf16.msra.mxu0 0
        %2171 = vmatprep.subr.bf16.mxu0 0
        %2172 = vmatpush1.bf16.msra.mxu0 0
        %2173 = vmatprep.mubr.bf16.mxu0 0
        %2174 = vmatmul.mubr.bf16.gmra.mrb[0].mxu0 %v2005
        %v2175 = vpop.f32.mrb[0].mxu0
        %v2176 = vadd.f32 0.0, %v2175
        %v2177 = vpop.f32.mrb[0].mxu0
        %v2178 = vadd.f32 0.0, %v2177
        %v2179 = vpop.f32.mrb[0].mxu0
        %v2180 = vadd.f32 0.0, %v2179
        %v2181 = vpop.f32.mrb[0].mxu0
        %v2182 = vadd.f32 0.0, %v2181
        %2183 = vmatprep.mubr.bf16.mxu0 0
        %2184 = vmatmul.mubr.bf16.gmra.mrb[0].mxu0 %v2006
        %v2185 = vpop.f32.mrb[0].mxu0
        %v2186 = vadd.f32 0.0, %v2185
        %v2187 = vpop.f32.mrb[0].mxu0
        %v2188 = vadd.f32 0.0, %v2187
        %v2189 = vpop.f32.mrb[0].mxu0
        %v2190 = vadd.f32 0.0, %v2189
        %v2191 = vpop.f32.mrb[0].mxu0
        %v2192 = vadd.f32 0.0, %v2191
        %2193 = vmatprep.mubr.bf16.mxu0 0
        %2194 = vmatmul.mubr.bf16.gmra.mrb[0].mxu0 %v2007
        %v2195 = vpop.f32.mrb[0].mxu0
        %v2196 = vadd.f32 0.0, %v2195
        %v2197 = vpop.f32.mrb[0].mxu0
        %v2198 = vadd.f32 0.0, %v2197
        %v2199 = vpop.f32.mrb[0].mxu0
        %v2200 = vadd.f32 0.0, %v2199
        %v2201 = vpop.f32.mrb[0].mxu0
        %v2202 = vadd.f32 0.0, %v2201
        %2203 = vmatprep.mubr.bf16.mxu0 0
        %2204 = vmatmul.mubr.bf16.gmra.mrb[0].mxu0 %v2008
        %v2205 = vpop.f32.mrb[0].mxu0
        %v2206 = vadd.f32 0.0, %v2205
        %v2207 = vpop.f32.mrb[0].mxu0
        %v2208 = vadd.f32 0.0, %v2207
        %v2209 = vpop.f32.mrb[0].mxu0
        %v2210 = vadd.f32 0.0, %v2209
        %v2211 = vpop.f32.mrb[0].mxu0
        %v2212 = vadd.f32 0.0, %v2211
        %2213 = vmatprep.mubr.bf16.mxu0 0
        %2214 = vmatmul.mubr.bf16.gmra.mrb[0].mxu0 %v2009
        %v2215 = vpop.f32.mrb[0].mxu0
        %v2216 = vadd.f32 0.0, %v2215
        %v2217 = vpop.f32.mrb[0].mxu0
        %v2218 = vadd.f32 0.0, %v2217
        %v2219 = vpop.f32.mrb[0].mxu0
        %v2220 = vadd.f32 0.0, %v2219
        %v2221 = vpop.f32.mrb[0].mxu0
        %v2222 = vadd.f32 0.0, %v2221
        %2223 = vmatprep.mubr.bf16.mxu0 0
        %2224 = vmatmul.mubr.bf16.gmra.mrb[0].mxu0 %v2010
        %v2225 = vpop.f32.mrb[0].mxu0
        %v2226 = vadd.f32 0.0, %v2225
        %v2227 = vpop.f32.mrb[0].mxu0
        %v2228 = vadd.f32 0.0, %v2227
        %v2229 = vpop.f32.mrb[0].mxu0
        %v2230 = vadd.f32 0.0, %v2229
        %v2231 = vpop.f32.mrb[0].mxu0
        %v2232 = vadd.f32 0.0, %v2231
        %2233 = vmatprep.mubr.bf16.mxu0 0
        %2234 = vmatmul.mubr.bf16.gmra.mrb[0].mxu0 %v2011
        %v2235 = vpop.f32.mrb[0].mxu0
        %v2236 = vadd.f32 0.0, %v2235
        %v2237 = vpop.f32.mrb[0].mxu0
        %v2238 = vadd.f32 0.0, %v2237
        %v2239 = vpop.f32.mrb[0].mxu0
        %v2240 = vadd.f32 0.0, %v2239
        %v2241 = vpop.f32.mrb[0].mxu0
        %v2242 = vadd.f32 0.0, %v2241
        %2243 = vmatprep.mubr.bf16.mxu0 0
        %2244 = vmatmul.mubr.bf16.gmra.mrb[0].mxu0 %v2012
        %v2245 = vpop.f32.mrb[0].mxu0
        %v2246 = vadd.f32 0.0, %v2245
        %v2247 = vpop.f32.mrb[0].mxu0
        %v2248 = vadd.f32 0.0, %v2247
        %v2249 = vpop.f32.mrb[0].mxu0
        %v2250 = vadd.f32 0.0, %v2249
        %v2251 = vpop.f32.mrb[0].mxu0
        %v2252 = vadd.f32 0.0, %v2251
        %2253 = vdwg.mxu0
        %v2254 = vadd.f32 %v2013, %v2176
        %v2255 = vadd.f32 %v2014, %v2178
        %v2256 = vadd.f32 %v2015, %v2180
        %v2257 = vadd.f32 %v2016, %v2182
        %v2258 = vadd.f32 %v2017, %v2186
        %v2259 = vadd.f32 %v2018, %v2188
        %v2260 = vadd.f32 %v2019, %v2190
        %v2261 = vadd.f32 %v2020, %v2192
        %v2262 = vadd.f32 %v2021, %v2196
        %v2263 = vadd.f32 %v2022, %v2198
        %v2264 = vadd.f32 %v2023, %v2200
        %v2265 = vadd.f32 %v2024, %v2202
        %v2266 = vadd.f32 %v2025, %v2206
        %v2267 = vadd.f32 %v2026, %v2208
        %v2268 = vadd.f32 %v2027, %v2210
        %v2269 = vadd.f32 %v2028, %v2212
        %v2270 = vadd.f32 %v2029, %v2216
        %v2271 = vadd.f32 %v2030, %v2218
        %v2272 = vadd.f32 %v2031, %v2220
        %v2273 = vadd.f32 %v2032, %v2222
        %v2274 = vadd.f32 %v2033, %v2226
        %v2275 = vadd.f32 %v2034, %v2228
        %v2276 = vadd.f32 %v2035, %v2230
        %v2277 = vadd.f32 %v2036, %v2232
        %v2278 = vadd.f32 %v2037, %v2236
        %v2279 = vadd.f32 %v2038, %v2238
        %v2280 = vadd.f32 %v2039, %v2240
        %v2281 = vadd.f32 %v2040, %v2242
        %v2282 = vadd.f32 %v2041, %v2246
        %v2283 = vadd.f32 %v2042, %v2248
        %v2284 = vadd.f32 %v2043, %v2250
        %v2285 = vadd.f32 %v2044, %v2252
        %2286 = vst [vmem:[#allocation3] sm:$0xff] %v2254
        %2287 = vst [vmem:[#allocation3 + $0x8] sm:$0xff] %v2255
        %2288 = vst [vmem:[#allocation3 + $0x10] sm:$0xff] %v2256
        %2289 = vst [vmem:[#allocation3 + $0x18] sm:$0xff] %v2257
        %2290 = vst [vmem:[#allocation3 + $0x20] sm:$0xff] %v2258
        %2291 = vst [vmem:[#allocation3 + $0x28] sm:$0xff] %v2259
        %2292 = vst [vmem:[#allocation3 + $0x30] sm:$0xff] %v2260
        %2293 = vst [vmem:[#allocation3 + $0x38] sm:$0xff] %v2261
        %2294 = vst [vmem:[#allocation3 + $0x40] sm:$0xff] %v2262
        %2295 = vst [vmem:[#allocation3 + $0x48] sm:$0xff] %v2263
        %2296 = vst [vmem:[#allocation3 + $0x50] sm:$0xff] %v2264
        %2297 = vst [vmem:[#allocation3 + $0x58] sm:$0xff] %v2265
        %2298 = vst [vmem:[#allocation3 + $0x60] sm:$0xff] %v2266
        %2299 = vst [vmem:[#allocation3 + $0x68] sm:$0xff] %v2267
        %2300 = vst [vmem:[#allocation3 + $0x70] sm:$0xff] %v2268
        %2301 = vst [vmem:[#allocation3 + $0x78] sm:$0xff] %v2269
        %2302 = vst [vmem:[#allocation3 + $0x80] sm:$0xff] %v2270
        %2303 = vst [vmem:[#allocation3 + $0x88] sm:$0xff] %v2271
        %2304 = vst [vmem:[#allocation3 + $0x90] sm:$0xff] %v2272
        %2305 = vst [vmem:[#allocation3 + $0x98] sm:$0xff] %v2273
        %2306 = vst [vmem:[#allocation3 + $0xa0] sm:$0xff] %v2274
        %2307 = vst [vmem:[#allocation3 + $0xa8] sm:$0xff] %v2275
        %2308 = vst [vmem:[#allocation3 + $0xb0] sm:$0xff] %v2276
        %2309 = vst [vmem:[#allocation3 + $0xb8] sm:$0xff] %v2277
        %2310 = vst [vmem:[#allocation3 + $0xc0] sm:$0xff] %v2278
        %2311 = vst [vmem:[#allocation3 + $0xc8] sm:$0xff] %v2279
        %2312 = vst [vmem:[#allocation3 + $0xd0] sm:$0xff] %v2280
        %2313 = vst [vmem:[#allocation3 + $0xd8] sm:$0xff] %v2281
        %2314 = vst [vmem:[#allocation3 + $0xe0] sm:$0xff] %v2282
        %2315 = vst [vmem:[#allocation3 + $0xe8] sm:$0xff] %v2283
        %2316 = vst [vmem:[#allocation3 + $0xf0] sm:$0xff] %v2284
        %2317 = vst [vmem:[#allocation3 + $0xf8] sm:$0xff] %v2285
        %p2318 = scmp.eq.s32.totalorder %s22, 2
        // Predicated region
        $region131: #{share_svd_expert_forward.1} parent=117 // pred_check
          %p2319 = pneg %p2318
        $region132: #{share_svd_expert_forward.1} parent=117 // pred_check_branch
          %2321 = sbr.rel (%p2319) target = $region134
        $region133: #{share_svd_expert_forward.1} parent=117 // pred_region
          %v2322 = vld [vmem:[#allocation3] sm:$0xff]
          %v2323 = vld [vmem:[#allocation3 + $0x8] sm:$0xff]
          %v2324 = vld [vmem:[#allocation3 + $0x10] sm:$0xff]
          %v2325 = vld [vmem:[#allocation3 + $0x18] sm:$0xff]
          %v2326 = vld [vmem:[#allocation3 + $0x20] sm:$0xff]
          %v2327 = vld [vmem:[#allocation3 + $0x28] sm:$0xff]
          %v2328 = vld [vmem:[#allocation3 + $0x30] sm:$0xff]
          %v2329 = vld [vmem:[#allocation3 + $0x38] sm:$0xff]
          %v2330 = vld [vmem:[#allocation3 + $0x40] sm:$0xff]
          %v2331 = vld [vmem:[#allocation3 + $0x48] sm:$0xff]
          %v2332 = vld [vmem:[#allocation3 + $0x50] sm:$0xff]
          %v2333 = vld [vmem:[#allocation3 + $0x58] sm:$0xff]
          %v2334 = vld [vmem:[#allocation3 + $0x60] sm:$0xff]
          %v2335 = vld [vmem:[#allocation3 + $0x68] sm:$0xff]
          %v2336 = vld [vmem:[#allocation3 + $0x70] sm:$0xff]
          %v2337 = vld [vmem:[#allocation3 + $0x78] sm:$0xff]
          %v2338 = vld [vmem:[#allocation3 + $0x80] sm:$0xff]
          %v2339 = vld [vmem:[#allocation3 + $0x88] sm:$0xff]
          %v2340 = vld [vmem:[#allocation3 + $0x90] sm:$0xff]
          %v2341 = vld [vmem:[#allocation3 + $0x98] sm:$0xff]
          %v2342 = vld [vmem:[#allocation3 + $0xa0] sm:$0xff]
          %v2343 = vld [vmem:[#allocation3 + $0xa8] sm:$0xff]
          %v2344 = vld [vmem:[#allocation3 + $0xb0] sm:$0xff]
          %v2345 = vld [vmem:[#allocation3 + $0xb8] sm:$0xff]
          %v2346 = vld [vmem:[#allocation3 + $0xc0] sm:$0xff]
          %v2347 = vld [vmem:[#allocation3 + $0xc8] sm:$0xff]
          %v2348 = vld [vmem:[#allocation3 + $0xd0] sm:$0xff]
          %v2349 = vld [vmem:[#allocation3 + $0xd8] sm:$0xff]
          %v2350 = vld [vmem:[#allocation3 + $0xe0] sm:$0xff]
          %v2351 = vld [vmem:[#allocation3 + $0xe8] sm:$0xff]
          %v2352 = vld [vmem:[#allocation3 + $0xf0] sm:$0xff]
          %v2353 = vld [vmem:[#allocation3 + $0xf8] sm:$0xff]
          %v2354 = vpack.c.bf16 %v2324, %v2322
          %v2355 = vpack.c.bf16 %v2325, %v2323
          %v2356 = vpack.c.bf16 %v2328, %v2326
          %v2357 = vpack.c.bf16 %v2329, %v2327
          %v2358 = vpack.c.bf16 %v2332, %v2330
          %v2359 = vpack.c.bf16 %v2333, %v2331
          %v2360 = vpack.c.bf16 %v2336, %v2334
          %v2361 = vpack.c.bf16 %v2337, %v2335
          %v2362 = vpack.c.bf16 %v2340, %v2338
          %v2363 = vpack.c.bf16 %v2341, %v2339
          %v2364 = vpack.c.bf16 %v2344, %v2342
          %v2365 = vpack.c.bf16 %v2345, %v2343
          %v2366 = vpack.c.bf16 %v2348, %v2346
          %v2367 = vpack.c.bf16 %v2349, %v2347
          %v2368 = vpack.c.bf16 %v2352, %v2350
          %v2369 = vpack.c.bf16 %v2353, %v2351
          %v2370 = vld [vmem:[%s5] sm:$0xff]
          %v2371 = vld [vmem:[%s5 + $0x8] sm:$0xff]
          %v2372 = vld [vmem:[%s5 + $0x10] sm:$0xff]
          %v2373 = vld [vmem:[%s5 + $0x18] sm:$0xff]
          %v2374 = vld [vmem:[%s5 + $0x20] sm:$0xff]
          %v2375 = vld [vmem:[%s5 + $0x28] sm:$0xff]
          %v2376 = vld [vmem:[%s5 + $0x30] sm:$0xff]
          %v2377 = vld [vmem:[%s5 + $0x38] sm:$0xff]
          %v2378 = vld [vmem:[%s5 + $0x40] sm:$0xff]
          %v2379 = vld [vmem:[%s5 + $0x48] sm:$0xff]
          %v2380 = vld [vmem:[%s5 + $0x50] sm:$0xff]
          %v2381 = vld [vmem:[%s5 + $0x58] sm:$0xff]
          %v2382 = vld [vmem:[%s5 + $0x60] sm:$0xff]
          %v2383 = vld [vmem:[%s5 + $0x68] sm:$0xff]
          %v2384 = vld [vmem:[%s5 + $0x70] sm:$0xff]
          %v2385 = vld [vmem:[%s5 + $0x78] sm:$0xff]
          %v2386 = vld [vmem:[%s5 + $0x80] sm:$0xff]
          %v2387 = vld [vmem:[%s5 + $0x88] sm:$0xff]
          %v2388 = vld [vmem:[%s5 + $0x90] sm:$0xff]
          %v2389 = vld [vmem:[%s5 + $0x98] sm:$0xff]
          %v2390 = vld [vmem:[%s5 + $0xa0] sm:$0xff]
          %v2391 = vld [vmem:[%s5 + $0xa8] sm:$0xff]
          %v2392 = vld [vmem:[%s5 + $0xb0] sm:$0xff]
          %v2393 = vld [vmem:[%s5 + $0xb8] sm:$0xff]
          %v2394 = vld [vmem:[%s5 + $0xc0] sm:$0xff]
          %v2395 = vld [vmem:[%s5 + $0xc8] sm:$0xff]
          %v2396 = vld [vmem:[%s5 + $0xd0] sm:$0xff]
          %v2397 = vld [vmem:[%s5 + $0xd8] sm:$0xff]
          %v2398 = vld [vmem:[%s5 + $0xe0] sm:$0xff]
          %v2399 = vld [vmem:[%s5 + $0xe8] sm:$0xff]
          %v2400 = vld [vmem:[%s5 + $0xf0] sm:$0xff]
          %v2401 = vld [vmem:[%s5 + $0xf8] sm:$0xff]
          %v2434 = vunpack.c.l.b16 %v2370
          %v2435 = vunpack.c.h.b16 %v2370
          %v2436 = vunpack.c.l.b16 %v2371
          %v2437 = vunpack.c.h.b16 %v2371
          %v2438 = vunpack.c.l.b16 %v2372
          %v2439 = vunpack.c.h.b16 %v2372
          %v2440 = vunpack.c.l.b16 %v2373
          %v2441 = vunpack.c.h.b16 %v2373
          %v2442 = vunpack.c.l.b16 %v2374
          %v2443 = vunpack.c.h.b16 %v2374
          %v2444 = vunpack.c.l.b16 %v2375
          %v2445 = vunpack.c.h.b16 %v2375
          %v2446 = vunpack.c.l.b16 %v2376
          %v2447 = vunpack.c.h.b16 %v2376
          %v2448 = vunpack.c.l.b16 %v2377
          %v2449 = vunpack.c.h.b16 %v2377
          %v2450 = vunpack.c.l.b16 %v2378
          %v2451 = vunpack.c.h.b16 %v2378
          %v2452 = vunpack.c.l.b16 %v2379
          %v2453 = vunpack.c.h.b16 %v2379
          %v2454 = vunpack.c.l.b16 %v2380
          %v2455 = vunpack.c.h.b16 %v2380
          %v2456 = vunpack.c.l.b16 %v2381
          %v2457 = vunpack.c.h.b16 %v2381
          %v2458 = vunpack.c.l.b16 %v2382
          %v2459 = vunpack.c.h.b16 %v2382
          %v2460 = vunpack.c.l.b16 %v2383
          %v2461 = vunpack.c.h.b16 %v2383
          %v2462 = vunpack.c.l.b16 %v2384
          %v2463 = vunpack.c.h.b16 %v2384
          %v2464 = vunpack.c.l.b16 %v2385
          %v2465 = vunpack.c.h.b16 %v2385
          %v2466 = vunpack.c.l.b16 %v2386
          %v2467 = vunpack.c.h.b16 %v2386
          %v2468 = vunpack.c.l.b16 %v2387
          %v2469 = vunpack.c.h.b16 %v2387
          %v2470 = vunpack.c.l.b16 %v2388
          %v2471 = vunpack.c.h.b16 %v2388
          %v2472 = vunpack.c.l.b16 %v2389
          %v2473 = vunpack.c.h.b16 %v2389
          %v2474 = vunpack.c.l.b16 %v2390
          %v2475 = vunpack.c.h.b16 %v2390
          %v2476 = vunpack.c.l.b16 %v2391
          %v2477 = vunpack.c.h.b16 %v2391
          %v2478 = vunpack.c.l.b16 %v2392
          %v2479 = vunpack.c.h.b16 %v2392
          %v2480 = vunpack.c.l.b16 %v2393
          %v2481 = vunpack.c.h.b16 %v2393
          %v2482 = vunpack.c.l.b16 %v2394
          %v2483 = vunpack.c.h.b16 %v2394
          %v2484 = vunpack.c.l.b16 %v2395
          %v2485 = vunpack.c.h.b16 %v2395
          %v2486 = vunpack.c.l.b16 %v2396
          %v2487 = vunpack.c.h.b16 %v2396
          %v2488 = vunpack.c.l.b16 %v2397
          %v2489 = vunpack.c.h.b16 %v2397
          %v2490 = vunpack.c.l.b16 %v2398
          %v2491 = vunpack.c.h.b16 %v2398
          %v2492 = vunpack.c.l.b16 %v2399
          %v2493 = vunpack.c.h.b16 %v2399
          %v2494 = vunpack.c.l.b16 %v2400
          %v2495 = vunpack.c.h.b16 %v2400
          %v2496 = vunpack.c.l.b16 %v2401
          %v2497 = vunpack.c.h.b16 %v2401
          %v2498 = vpack.c.b16 %v2436, %v2434
          %v2499 = vpack.c.b16 %v2437, %v2435
          %v2500 = vpack.c.b16 %v2440, %v2438
          %v2501 = vpack.c.b16 %v2441, %v2439
          %v2502 = vpack.c.b16 %v2444, %v2442
          %v2503 = vpack.c.b16 %v2445, %v2443
          %v2504 = vpack.c.b16 %v2448, %v2446
          %v2505 = vpack.c.b16 %v2449, %v2447
          %v2506 = vpack.c.b16 %v2452, %v2450
          %v2507 = vpack.c.b16 %v2453, %v2451
          %v2508 = vpack.c.b16 %v2456, %v2454
          %v2509 = vpack.c.b16 %v2457, %v2455
          %v2510 = vpack.c.b16 %v2460, %v2458
          %v2511 = vpack.c.b16 %v2461, %v2459
          %v2512 = vpack.c.b16 %v2464, %v2462
          %v2513 = vpack.c.b16 %v2465, %v2463
          %v2514 = vpack.c.b16 %v2468, %v2466
          %v2515 = vpack.c.b16 %v2469, %v2467
          %v2516 = vpack.c.b16 %v2472, %v2470
          %v2517 = vpack.c.b16 %v2473, %v2471
          %v2518 = vpack.c.b16 %v2476, %v2474
          %v2519 = vpack.c.b16 %v2477, %v2475
          %v2520 = vpack.c.b16 %v2480, %v2478
          %v2521 = vpack.c.b16 %v2481, %v2479
          %v2522 = vpack.c.b16 %v2484, %v2482
          %v2523 = vpack.c.b16 %v2485, %v2483
          %v2524 = vpack.c.b16 %v2488, %v2486
          %v2525 = vpack.c.b16 %v2489, %v2487
          %v2526 = vpack.c.b16 %v2492, %v2490
          %v2527 = vpack.c.b16 %v2493, %v2491
          %v2528 = vpack.c.b16 %v2496, %v2494
          %v2529 = vpack.c.b16 %v2497, %v2495
          %2562 = vmatprep.subr.bf16.mxu0 %v2499
          %2563 = vmatpush1.bf16.msra.mxu0 %v2498
          %2564 = vmatprep.subr.bf16.mxu0 %v2501
          %2565 = vmatpush1.bf16.msra.mxu0 %v2500
          %2566 = vmatprep.subr.bf16.mxu0 %v2503
          %2567 = vmatpush1.bf16.msra.mxu0 %v2502
          %2568 = vmatprep.subr.bf16.mxu0 %v2505
          %2569 = vmatpush1.bf16.msra.mxu0 %v2504
          %2570 = vmatprep.subr.bf16.mxu0 %v2507
          %2571 = vmatpush1.bf16.msra.mxu0 %v2506
          %2572 = vmatprep.subr.bf16.mxu0 %v2509
          %2573 = vmatpush1.bf16.msra.mxu0 %v2508
          %2574 = vmatprep.subr.bf16.mxu0 %v2511
          %2575 = vmatpush1.bf16.msra.mxu0 %v2510
          %2576 = vmatprep.subr.bf16.mxu0 %v2513
          %2577 = vmatpush1.bf16.msra.mxu0 %v2512
          %2578 = vmatprep.subr.bf16.mxu0 %v2515
          %2579 = vmatpush1.bf16.msra.mxu0 %v2514
          %2580 = vmatprep.subr.bf16.mxu0 %v2517
          %2581 = vmatpush1.bf16.msra.mxu0 %v2516
          %2582 = vmatprep.subr.bf16.mxu0 %v2519
          %2583 = vmatpush1.bf16.msra.mxu0 %v2518
          %2584 = vmatprep.subr.bf16.mxu0 %v2521
          %2585 = vmatpush1.bf16.msra.mxu0 %v2520
          %2586 = vmatprep.subr.bf16.mxu0 %v2523
          %2587 = vmatpush1.bf16.msra.mxu0 %v2522
          %2588 = vmatprep.subr.bf16.mxu0 %v2525
          %2589 = vmatpush1.bf16.msra.mxu0 %v2524
          %2590 = vmatprep.subr.bf16.mxu0 %v2527
          %2591 = vmatpush1.bf16.msra.mxu0 %v2526
          %2592 = vmatprep.subr.bf16.mxu0 %v2529
          %2593 = vmatpush1.bf16.msra.mxu0 %v2528
          %2594 = vmatprep.mubr.bf16.mxu0 %v2355
          %2595 = vmatmul.mubr.bf16.gmra.mrb[0].mxu0 %v2354
          %v2596 = vpop.f32.mrb[0].mxu0
          %v2597 = vadd.f32 0.0, %v2596
          %v2598 = vpop.f32.mrb[0].mxu0
          %v2599 = vadd.f32 0.0, %v2598
          %v2600 = vpop.f32.mrb[0].mxu0
          %v2601 = vadd.f32 0.0, %v2600
          %v2602 = vpop.f32.mrb[0].mxu0
          %v2603 = vadd.f32 0.0, %v2602
          %2604 = vmatprep.mubr.bf16.mxu0 %v2357
          %2605 = vmatmul.mubr.bf16.gmra.mrb[0].mxu0 %v2356
          %v2606 = vpop.f32.mrb[0].mxu0
          %v2607 = vadd.f32 0.0, %v2606
          %v2608 = vpop.f32.mrb[0].mxu0
          %v2609 = vadd.f32 0.0, %v2608
          %v2610 = vpop.f32.mrb[0].mxu0
          %v2611 = vadd.f32 0.0, %v2610
          %v2612 = vpop.f32.mrb[0].mxu0
          %v2613 = vadd.f32 0.0, %v2612
          %2614 = vmatprep.mubr.bf16.mxu0 %v2359
          %2615 = vmatmul.mubr.bf16.gmra.mrb[0].mxu0 %v2358
          %v2616 = vpop.f32.mrb[0].mxu0
          %v2617 = vadd.f32 0.0, %v2616
          %v2618 = vpop.f32.mrb[0].mxu0
          %v2619 = vadd.f32 0.0, %v2618
          %v2620 = vpop.f32.mrb[0].mxu0
          %v2621 = vadd.f32 0.0, %v2620
          %v2622 = vpop.f32.mrb[0].mxu0
          %v2623 = vadd.f32 0.0, %v2622
          %2624 = vmatprep.mubr.bf16.mxu0 %v2361
          %2625 = vmatmul.mubr.bf16.gmra.mrb[0].mxu0 %v2360
          %v2626 = vpop.f32.mrb[0].mxu0
          %v2627 = vadd.f32 0.0, %v2626
          %v2628 = vpop.f32.mrb[0].mxu0
          %v2629 = vadd.f32 0.0, %v2628
          %v2630 = vpop.f32.mrb[0].mxu0
          %v2631 = vadd.f32 0.0, %v2630
          %v2632 = vpop.f32.mrb[0].mxu0
          %v2633 = vadd.f32 0.0, %v2632
          %2634 = vmatprep.mubr.bf16.mxu0 %v2363
          %2635 = vmatmul.mubr.bf16.gmra.mrb[0].mxu0 %v2362
          %v2636 = vpop.f32.mrb[0].mxu0
          %v2637 = vadd.f32 0.0, %v2636
          %v2638 = vpop.f32.mrb[0].mxu0
          %v2639 = vadd.f32 0.0, %v2638
          %v2640 = vpop.f32.mrb[0].mxu0
          %v2641 = vadd.f32 0.0, %v2640
          %v2642 = vpop.f32.mrb[0].mxu0
          %v2643 = vadd.f32 0.0, %v2642
          %2644 = vmatprep.mubr.bf16.mxu0 %v2365
          %2645 = vmatmul.mubr.bf16.gmra.mrb[0].mxu0 %v2364
          %v2646 = vpop.f32.mrb[0].mxu0
          %v2647 = vadd.f32 0.0, %v2646
          %v2648 = vpop.f32.mrb[0].mxu0
          %v2649 = vadd.f32 0.0, %v2648
          %v2650 = vpop.f32.mrb[0].mxu0
          %v2651 = vadd.f32 0.0, %v2650
          %v2652 = vpop.f32.mrb[0].mxu0
          %v2653 = vadd.f32 0.0, %v2652
          %2654 = vmatprep.mubr.bf16.mxu0 %v2367
          %2655 = vmatmul.mubr.bf16.gmra.mrb[0].mxu0 %v2366
          %v2656 = vpop.f32.mrb[0].mxu0
          %v2657 = vadd.f32 0.0, %v2656
          %v2658 = vpop.f32.mrb[0].mxu0
          %v2659 = vadd.f32 0.0, %v2658
          %v2660 = vpop.f32.mrb[0].mxu0
          %v2661 = vadd.f32 0.0, %v2660
          %v2662 = vpop.f32.mrb[0].mxu0
          %v2663 = vadd.f32 0.0, %v2662
          %2664 = vmatprep.mubr.bf16.mxu0 %v2369
          %2665 = vmatmul.mubr.bf16.gmra.mrb[0].mxu0 %v2368
          %v2666 = vpop.f32.mrb[0].mxu0
          %v2667 = vadd.f32 0.0, %v2666
          %v2668 = vpop.f32.mrb[0].mxu0
          %v2669 = vadd.f32 0.0, %v2668
          %v2670 = vpop.f32.mrb[0].mxu0
          %v2671 = vadd.f32 0.0, %v2670
          %v2672 = vpop.f32.mrb[0].mxu0
          %v2673 = vadd.f32 0.0, %v2672
          %2674 = vdwg.mxu0
          %v2675 = vpack.c.bf16 %v2601, %v2597
          %v2676 = vpack.c.bf16 %v2603, %v2599
          %v2677 = vpack.c.bf16 %v2611, %v2607
          %v2678 = vpack.c.bf16 %v2613, %v2609
          %v2679 = vpack.c.bf16 %v2621, %v2617
          %v2680 = vpack.c.bf16 %v2623, %v2619
          %v2681 = vpack.c.bf16 %v2631, %v2627
          %v2682 = vpack.c.bf16 %v2633, %v2629
          %v2683 = vpack.c.bf16 %v2641, %v2637
          %v2684 = vpack.c.bf16 %v2643, %v2639
          %v2685 = vpack.c.bf16 %v2651, %v2647
          %v2686 = vpack.c.bf16 %v2653, %v2649
          %v2687 = vpack.c.bf16 %v2661, %v2657
          %v2688 = vpack.c.bf16 %v2663, %v2659
          %v2689 = vpack.c.bf16 %v2671, %v2667
          %v2690 = vpack.c.bf16 %v2673, %v2669
          %v2707 = vunpack.c.l.b16 %v2675
          %v2708 = vunpack.c.l.b16 %v2676
          %v2709 = vunpack.c.h.b16 %v2675
          %v2710 = vunpack.c.h.b16 %v2676
          %v2711 = vunpack.c.l.b16 %v2677
          %v2712 = vunpack.c.l.b16 %v2678
          %v2713 = vunpack.c.h.b16 %v2677
          %v2714 = vunpack.c.h.b16 %v2678
          %v2715 = vunpack.c.l.b16 %v2679
          %v2716 = vunpack.c.l.b16 %v2680
          %v2717 = vunpack.c.h.b16 %v2679
          %v2718 = vunpack.c.h.b16 %v2680
          %v2719 = vunpack.c.l.b16 %v2681
          %v2720 = vunpack.c.l.b16 %v2682
          %v2721 = vunpack.c.h.b16 %v2681
          %v2722 = vunpack.c.h.b16 %v2682
          %v2723 = vunpack.c.l.b16 %v2683
          %v2724 = vunpack.c.l.b16 %v2684
          %v2725 = vunpack.c.h.b16 %v2683
          %v2726 = vunpack.c.h.b16 %v2684
          %v2727 = vunpack.c.l.b16 %v2685
          %v2728 = vunpack.c.l.b16 %v2686
          %v2729 = vunpack.c.h.b16 %v2685
          %v2730 = vunpack.c.h.b16 %v2686
          %v2731 = vunpack.c.l.b16 %v2687
          %v2732 = vunpack.c.l.b16 %v2688
          %v2733 = vunpack.c.h.b16 %v2687
          %v2734 = vunpack.c.h.b16 %v2688
          %v2735 = vunpack.c.l.b16 %v2689
          %v2736 = vunpack.c.l.b16 %v2690
          %v2737 = vunpack.c.h.b16 %v2689
          %v2738 = vunpack.c.h.b16 %v2690
          %v2739 = vpack.c.b16 %v2708, %v2707
          %v2740 = vpack.c.b16 %v2710, %v2709
          %v2741 = vpack.c.b16 %v2712, %v2711
          %v2742 = vpack.c.b16 %v2714, %v2713
          %v2743 = vpack.c.b16 %v2716, %v2715
          %v2744 = vpack.c.b16 %v2718, %v2717
          %v2745 = vpack.c.b16 %v2720, %v2719
          %v2746 = vpack.c.b16 %v2722, %v2721
          %v2747 = vpack.c.b16 %v2724, %v2723
          %v2748 = vpack.c.b16 %v2726, %v2725
          %v2749 = vpack.c.b16 %v2728, %v2727
          %v2750 = vpack.c.b16 %v2730, %v2729
          %v2751 = vpack.c.b16 %v2732, %v2731
          %v2752 = vpack.c.b16 %v2734, %v2733
          %v2753 = vpack.c.b16 %v2736, %v2735
          %v2754 = vpack.c.b16 %v2738, %v2737
          %vm2771 = vcmask 1043456
          %vm2772 = vcmask 523268
          %vm2773 = vmor %vm2772, %vm2771
          %2774 = vst.msk [vmem:[%s665] sm:$0xff] %vm2773, %v2739
          %2775 = vst.msk [vmem:[%s665 + $0x8] sm:$0xff] %vm2773, %v2740
          %2776 = vst.msk [vmem:[%s665 + $0x10] sm:$0xff] %vm2773, %v2741
          %2777 = vst.msk [vmem:[%s665 + $0x18] sm:$0xff] %vm2773, %v2742
          %2778 = vst.msk [vmem:[%s665 + $0x20] sm:$0xff] %vm2773, %v2743
          %2779 = vst.msk [vmem:[%s665 + $0x28] sm:$0xff] %vm2773, %v2744
          %2780 = vst.msk [vmem:[%s665 + $0x30] sm:$0xff] %vm2773, %v2745
          %2781 = vst.msk [vmem:[%s665 + $0x38] sm:$0xff] %vm2773, %v2746
          %2782 = vst.msk [vmem:[%s665 + $0x40] sm:$0xff] %vm2773, %v2747
          %2783 = vst.msk [vmem:[%s665 + $0x48] sm:$0xff] %vm2773, %v2748
          %2784 = vst.msk [vmem:[%s665 + $0x50] sm:$0xff] %vm2773, %v2749
          %2785 = vst.msk [vmem:[%s665 + $0x58] sm:$0xff] %vm2773, %v2750
          %2786 = vst.msk [vmem:[%s665 + $0x60] sm:$0xff] %vm2773, %v2751
          %2787 = vst.msk [vmem:[%s665 + $0x68] sm:$0xff] %vm2773, %v2752
          %2788 = vst.msk [vmem:[%s665 + $0x70] sm:$0xff] %vm2773, %v2753
          %2789 = vst.msk [vmem:[%s665 + $0x78] sm:$0xff] %vm2773, %v2754
        $region134: #{share_svd_expert_forward.1} parent=117 // pred_fallthru
          _
        %s2790 = smul.u32 16, %s21
        %p2791 = scmp.lt.s32.totalorder %s2790, 31
        %s2792 = scalar_select %p2791, %s2790, 31
        %s2793 = smul.addr %s2792, 2
        %s2794 = smul.addr %s2793, 4
        %s2795 = scalar_lea.vmem %s6, %s2794
        // Predicated region
        $region135: #{share_svd_expert_forward.1} parent=117 // pred_check
          %p2796 = pneg %p193
        $region136: #{share_svd_expert_forward.1} parent=117 // pred_check_branch
          %2798 = sbr.rel (%p2796) target = $region138
        $region137: #{share_svd_expert_forward.1} parent=117 // pred_region
          %s2799 = smul.u32 16, %s21
        $region138: #{share_svd_expert_forward.1} parent=117 // pred_fallthru
          _
      $region118: #{share_svd_expert_forward.1} parent=5 // pred_fallthru
        _
      %p2800 = scmp.le.s32.totalorder 2, %s12
      // Predicated region
      $region139: #{share_svd_expert_forward.1} parent=5 // pred_check
        %p2801 = pneg %p2800
      $region140: #{share_svd_expert_forward.1} parent=5 // pred_check_branch
        %2803 = sbr.rel (%p2801) target = $region142
      $region141: #{share_svd_expert_forward.1} parent=5 // pred_region
        %s2804 = ssub.s32 %s12, 2
        // Predicated region
        $region143: #{share_svd_expert_forward.1} parent=141 // pred_check
          %p2805 = pneg %p199
        $region144: #{share_svd_expert_forward.1} parent=141 // pred_check_branch
          %2807 = sbr.rel (%p2805) target = $region146
        $region145: #{share_svd_expert_forward.1} parent=141 // pred_region
          %s2808 = smul.u32 16, %s23
          %p2809 = scmp.lt.s32.totalorder %s2808, 31
          %s2810 = scalar_select %p2809, %s2808, 31
          %s2811 = smul.addr %s2810, 2
          %s2812 = smul.addr %s2811, 4
          %s2813 = scalar_lea.vmem %s6, %s2812
        $region146: #{share_svd_expert_forward.1} parent=141 // pred_fallthru
          _
      $region142: #{share_svd_expert_forward.1} parent=5 // pred_fallthru
        _
    $region6: #{share_svd_expert_forward.1} parent=1 // loop_footer
      %s16 = sadd.s32 1, %s12
    $region7: #{share_svd_expert_forward.1} parent=1 // loop_footer_branch
      %11 = sbr.rel target = $region3
    $region8: #{share_svd_expert_forward.1} parent=1 // loop_exit
      _

</llo_original>
